<compile_context>
chip_gen: v5e
topology: v5e:2x2
jax: 0.10.0
libtpu: 0.0.40
codegen_flags: <defaults>
</compile_context>

<pallas_src>
import math

import jax
import jax.numpy as jnp
from jax import lax
from jax.experimental import pallas as pl
from jax.experimental.pallas import tpu as pltpu


# ----------------------------- fused Pallas kernel -----------------------------

def _make_fused_kernel(*, has_expand, use_res, has_sel, strip_h, W, Lpad,
                       hidden, oup):
    """One grid step = one (row-strip, batch) tile, fully fused in VMEM."""
    mid_len = strip_h * W                        # valid (non-halo) strip lanes

    def kernel(*refs):
        it = iter(refs)
        x_ref = next(it)                         # (1, Cin, strip_h*W)   f32
        xt_ref = next(it)                        # (1, 1, Cin, W)        f32 halo row above
        xb_ref = next(it)                        # (1, 1, Cin, W)        f32 halo row below
        cst_ref = next(it)                       # (Cmax, 16)            f32 packed constants
        w1_ref = next(it) if has_expand else None    # (hidden, Cin)     bf16 BN1-folded
        w2_ref = next(it)                        # (oup, hidden)         bf16 BN3-folded
        sel_ref = next(it) if has_sel else None      # (Lpad, out_lanes) bf16 0/1 subsample
        o_ref = next(it)                         # (1, oup, out_lanes)

        s = pl.program_id(0)
        f32 = jnp.float32
        cst = cst_ref[...]

        # ---- assemble the halo-padded strip: rows [top | strip | bot | 0-pad] ----
        x_strip = x_ref[0]                       # (Cin, strip_h*W)
        pieces = [xt_ref[0, 0], x_strip, xb_ref[0, 0]]
        extra = Lpad - (strip_h + 2) * W         # zero rows so the lane axis is %128
        if extra:
            pieces.append(jnp.zeros((x_strip.shape[0], extra), f32))
        x_pad = jnp.concatenate(pieces, axis=1)                       # (Cin, Lpad)

        lane = lax.broadcasted_iota(jnp.int32, (1, Lpad), 1)
        col = lane % W

        # ---- 1x1 expansion + folded BN + ReLU6 (bf16 MXU, f32 accumulate) ----
        if has_expand:
            b1 = cst[:hidden, 9:10]
            h = jnp.dot(w1_ref[...], x_pad.astype(jnp.bfloat16),
                        preferred_element_type=f32)
            h = jnp.clip(h + b1, 0.0, 6.0)
            # zero-padding happens in *hidden* space: halo rows that fall outside
            # the image must be 0 after the expansion (bias would make them != 0).
            top_ok = (s > 0).astype(f32)
            bot_ok = (s < pl.num_programs(0) - 1).astype(f32)
            border = jnp.where(lane < W, top_ok,
                               jnp.where(lane >= (strip_h + 1) * W, bot_ok, 1.0))
            h = h * border
        else:
            # expand_ratio == 1: the depthwise acts on x directly; out-of-image
            # halo rows were already zero-filled by the host.
            h = x_pad

        # ---- 3x3 depthwise (padding=1) + folded BN + ReLU6, f32 accumulate ----
        # Row neighbours come from the halo rows (no row masks needed); only the
        # dx != 0 taps need a column-edge mask, generated in-kernel from iota.
        keep_l = (col != 0).astype(f32)          # mask for dx = -1
        keep_r = (col != W - 1).astype(f32)      # mask for dx = +1
        dw = None
        for ky in range(3):
            for kx in range(3):
                dy, dx = ky - 1, kx - 1
                d = dy * W + dx
                tap = cst[:hidden, ky * 3 + kx:ky * 3 + kx + 1]       # (hidden, 1)
                t = h if d == 0 else pltpu.roll(h, shift=(-d) % Lpad, axis=1)
                t = t * tap
                if dx == -1:
                    t = t * keep_l
                elif dx == 1:
                    t = t * keep_r
                dw = t if dw is None else dw + t                      # stays a value DAG
        hdw = jnp.clip(dw + cst[:hidden, 10:11], 0.0, 6.0)            # (hidden, Lpad)

        # ---- 1x1 projection + folded BN (bf16 MXU, f32 accumulate) ----
        out = jnp.dot(w2_ref[...], hdw.astype(jnp.bfloat16),
                      preferred_element_type=f32)                     # (oup, Lpad)
        b3 = cst[:oup, 11:12]

        if has_sel:
            # stride 2: projection FIRST, then the tiny per-strip 0/1 pick matmul
            # (cost scales with oup, not hidden; sel is bounded per strip).
            out = jnp.dot(out.astype(jnp.bfloat16), sel_ref[...],
                          preferred_element_type=f32) + b3
        else:
            # drop the halo rows: shift one row left, keep the lane-aligned prefix.
            out = pltpu.roll(out, shift=Lpad - W, axis=1)[:, :mid_len] + b3
            if use_res:
                out = out + x_strip                                   # exact f32 residual
        o_ref[0] = out.astype(o_ref.dtype)

    return kernel


# --------------------------------- wrapper ---------------------------------

def _bn_fold(gamma, beta, mean, var, eps=1e-5):
    scale = gamma / jnp.sqrt(var + eps)
    return scale, beta - mean * scale


def _pick_strip_h(H, W, stride, Wo):
    """Smallest strip height (=> most grid steps / best pipelining) whose input and
    output blocks are lane-dense (last block dim % 128 == 0, or the full extent)."""
    for cand in range(stride, H + 1, stride):
        if H % cand:
            continue
        in_ok = (cand * W) % 128 == 0 or cand == H
        out_ok = ((cand // stride) * Wo) % 128 == 0 or cand == H
        if in_ok and out_ok:
            return cand
    return H
    # TODO(synk): at real resolutions also target a VMEM budget (8-16 MiB per step)
    # and pick strip_h == -2 mod the row quantum so no padded rows are wasted.


def inverted_residual_forward(x_nchw, params, stride, expand_ratio):
    """InvertedResidual.forward (eval-mode BN); x is NCHW (PyTorch), returns NCHW."""
    N, inp, H, W = x_nchw.shape
    hidden = params["w_dw"].shape[-1]
    oup = params["w_pw2"].shape[-1]
    assert stride in (1, 2)
    assert H % stride == 0 and W % stride == 0  # TODO(synk): ragged stride-2 shapes
    if expand_ratio == 1:
        assert hidden == inp
    use_res = (stride == 1) and (inp == oup)
    has_expand = expand_ratio != 1
    has_sel = stride != 1
    Ho, Wo = H // stride, W // stride
    f32, bf16 = jnp.float32, jnp.bfloat16

    # --- spatial row-strip tiling (leading, parallel grid axis) ---
    strip_h = _pick_strip_h(H, W, stride, Wo)
    S = H // strip_h
    out_rows = strip_h // stride
    out_lanes = out_rows * Wo
    # halo-padded strip length, rounded up so the lane axis is a 128 multiple
    row_quantum = 128 // math.gcd(W, 128)
    rows_pad = -(-(strip_h + 2) // row_quantum) * row_quantum
    Lpad = rows_pad * W

    x4 = x_nchw.astype(f32)                                   # (N, Cin, H, W)
    x3 = x4.reshape(N, inp, H * W)                            # free reshape

    # tiny host-built halo-row arrays (rows outside the image are zero)
    starts = jnp.arange(S) * strip_h

    def halo_rows(src_rows):
        rows = jnp.take(x4, jnp.clip(src_rows, 0, H - 1), axis=2)      # (N,Cin,S,W)
        valid = ((src_rows >= 0) & (src_rows <= H - 1)).astype(f32)
        rows = rows * valid[None, None, :, None]
        return jnp.transpose(rows, (0, 2, 1, 3))                        # (N,S,Cin,W)

    x_top = halo_rows(starts - 1)
    x_bot = halo_rows(starts + strip_h)

    # --- fold eval-mode BatchNorms into conv weights / packed per-channel biases ---
    s2, b2 = _bn_fold(*params["bn2"])
    s3, b3 = _bn_fold(*params["bn3"])
    Cmax = max(hidden, oup)
    cst = jnp.zeros((Cmax, 16), f32)
    taps = (params["w_dw"].astype(f32) * s2[None, None, :]).reshape(9, hidden).T
    cst = cst.at[:hidden, 0:9].set(taps)                      # 9 depthwise taps
    cst = cst.at[:hidden, 10].set(b2)                         # depthwise BN bias
    cst = cst.at[:oup, 11].set(b3)                            # projection BN bias
    w1 = None
    if has_expand:
        s1, b1 = _bn_fold(*params["bn1"])
        cst = cst.at[:hidden, 9].set(b1)                      # expand BN bias
        w1 = (params["w_pw1"].astype(f32).T * s1[:, None]).astype(bf16)  # (hidden, inp)
    w2 = (params["w_pw2"].astype(f32).T * s3[:, None]).astype(bf16)      # (oup, hidden)

    # --- per-strip 0/1 subsample matrix (stride=2 only), applied after projection ---
    sel = None
    if has_sel:
        src = ((1 + stride * jnp.arange(out_rows))[:, None] * W
               + stride * jnp.arange(Wo)[None, :]).reshape(-1)           # (out_lanes,)
        sel = (jnp.arange(Lpad)[:, None] == src[None, :]).astype(bf16)   # (Lpad, out_lanes)
        # TODO(synk): replace with an even-row/col lane pack (roll+select) to drop
        # the pick matmul entirely at large W.

    args = [x3, x_top, x_bot, cst]
    if has_expand:
        args.append(w1)
    args.append(w2)
    if has_sel:
        args.append(sel)

    kernel = _make_fused_kernel(has_expand=has_expand, use_res=use_res,
                                has_sel=has_sel, strip_h=strip_h, W=W,
                                Lpad=Lpad, hidden=hidden, oup=oup)

    def launch(single_buffer_consts):
        def const_spec(shape):
            nd = len(shape)
            if single_buffer_consts:
                return pl.BlockSpec(shape, lambda s, n: (0,) * nd,
                                    pipeline_mode=pl.Buffered(1))
            return pl.BlockSpec(shape, lambda s, n: (0,) * nd)

        in_specs = [
            pl.BlockSpec((1, inp, strip_h * W), lambda s, n: (n, 0, s)),
            pl.BlockSpec((1, 1, inp, W), lambda s, n: (n, s, 0, 0)),
            pl.BlockSpec((1, 1, inp, W), lambda s, n: (n, s, 0, 0)),
            const_spec((Cmax, 16)),
        ]
        if has_expand:
            in_specs.append(const_spec(tuple(w1.shape)))
        in_specs.append(const_spec(tuple(w2.shape)))
        if has_sel:
            in_specs.append(const_spec((Lpad, out_lanes)))

        return pl.pallas_call(
            kernel,
            out_shape=jax.ShapeDtypeStruct((N, oup, Ho * Wo), f32),
            grid=(S, N),
            in_specs=in_specs,
            out_specs=pl.BlockSpec((1, oup, out_lanes), lambda s, n: (n, 0, s)),
            compiler_params=pltpu.CompilerParams(
                dimension_semantics=("parallel", "parallel"),
                vmem_limit_bytes=48 * 1024 * 1024),
        )(*args)

    try:
        out = launch(True)
    except Exception:   # pl.Buffered(1) unsupported on this JAX -> default buffering
        out = launch(False)

    return out.reshape(N, oup, Ho, Wo)                        # free reshape -> NCHW


# ----------------------- pure-JAX reference (NCHW) -----------------------

def _ref_bn(x, gamma, beta, mean, var, eps=1e-5):
    r = lambda v: v.reshape(1, -1, 1, 1)
    return (x - r(mean)) / jnp.sqrt(r(var) + eps) * r(gamma) + r(beta)


def _ref_forward(x, params, stride, expand_ratio):
    inp = x.shape[1]
    hidden = params["w_dw"].shape[-1]
    oup = params["w_pw2"].shape[-1]
    use_res = (stride == 1) and (inp == oup)
    dn = ("NCHW", "OIHW", "NCHW")

    h = x
    if expand_ratio != 1:
        w1 = jnp.transpose(params["w_pw1"], (1, 0))[:, :, None, None]
        h = lax.conv_general_dilated(h, w1, (1, 1), "VALID", dimension_numbers=dn)
        h = jnp.clip(_ref_bn(h, *params["bn1"]), 0.0, 6.0)

    wd = jnp.transpose(params["w_dw"], (2, 0, 1))[:, None, :, :]
    h = lax.conv_general_dilated(h, wd, (stride, stride), ((1, 1), (1, 1)),
                                 dimension_numbers=dn, feature_group_count=hidden)
    h = jnp.clip(_ref_bn(h, *params["bn2"]), 0.0, 6.0)

    w2 = jnp.transpose(params["w_pw2"], (1, 0))[:, :, None, None]
    h = lax.conv_general_dilated(h, w2, (1, 1), "VALID", dimension_numbers=dn)
    h = _ref_bn(h, *params["bn3"])
    return x + h if use_res else h


# --------------------------------- main ---------------------------------

if __name__ == "__main__":
    key = jax.random.PRNGKey(0)

    def bn_params(k, c):
        k1, k2, k3, k4 = jax.random.split(k, 4)
        gamma = 1.0 + 0.1 * jax.random.normal(k1, (c,), jnp.float32)
        beta = 0.1 * jax.random.normal(k2, (c,), jnp.float32)
        mean = 0.1 * jax.random.normal(k3, (c,), jnp.float32)
        var = jnp.abs(jax.random.normal(k4, (c,), jnp.float32)) + 0.5
        return (gamma, beta, mean, var)

    def make_params(k, inp, oup, expand_ratio):
        hidden = int(inp * expand_ratio)
        ks = jax.random.split(k, 6)
        return {
            "w_pw1": 0.1 * jax.random.normal(ks[0], (inp, hidden), jnp.float32),
            "bn1": bn_params(ks[1], hidden),
            "w_dw": 0.1 * jax.random.normal(ks[2], (3, 3, hidden), jnp.float32),
            "bn2": bn_params(ks[3], hidden),
            "w_pw2": 0.1 * jax.random.normal(ks[4], (hidden, oup), jnp.float32),
            "bn3": bn_params(ks[5], oup),
        }

    N, H, W = 2, 16, 16
    configs = [
        # (inp, oup, stride, expand_ratio)
        (8, 8, 1, 4),    # residual path, 2 row strips
        (8, 16, 2, 4),   # stride-2 downsampling path
        (8, 8, 1, 1),    # expand_ratio == 1 path (with residual)
    ]
    for ci, (inp, oup, stride, expand_ratio) in enumerate(configs):
        kp, kx = jax.random.split(jax.random.fold_in(key, ci))
        params = make_params(kp, inp, oup, expand_ratio)
        x = jax.random.normal(kx, (N, inp, H, W), jnp.float32)

        out = jax.block_until_ready(
            inverted_residual_forward(x, params, stride, expand_ratio))
        ref = _ref_forward(x, params, stride, expand_ratio)
        assert out.shape == ref.shape, (ci, out.shape, ref.shape)
        err = float(jnp.max(jnp.abs(out - ref)))
        # bf16 matmul operands (f32 accumulate) -> slightly looser tolerance
        assert jnp.allclose(out, ref, atol=3e-2, rtol=3e-2), (ci, err)

    print("KERNEL_OK")
</pallas_src>

<mosaic_0001>
module attributes {stable_mosaic.version = 11 : i64} {
  func.func @kernel(%arg0: i32, %arg1: i32, %arg2: memref<1x8x128xf32, #tpu.memory_space<vmem>>, %arg3: memref<1x1x8x16xf32, #tpu.memory_space<vmem>>, %arg4: memref<1x1x8x16xf32, #tpu.memory_space<vmem>>, %arg5: memref<32x16xf32, #tpu.memory_space<vmem>>, %arg6: memref<32x8xbf16, #tpu.memory_space<vmem>>, %arg7: memref<8x32xbf16, #tpu.memory_space<vmem>>, %arg8: memref<1x8x128xf32, #tpu.memory_space<vmem>>) attributes {dimension_semantics = [#tpu.dimension_semantics<parallel>, #tpu.dimension_semantics<parallel>], iteration_bounds = array<i64: 2, 2>, scalar_prefetch = 0 : i64, scratch_operands = 0 : i64, tpu.core_type = #tpu.core_type<tc>, window_params = [{transform_indices = @transform_0, window_bounds = array<i64: 1, 8, 128>}, {transform_indices = @transform_1, window_bounds = array<i64: 1, 1, 8, 16>}, {transform_indices = @transform_2, window_bounds = array<i64: 1, 1, 8, 16>}, {pipeline_mode = #tpu.pipeline_mode<synchronous>, transform_indices = @transform_3, window_bounds = array<i64: 32, 16>}, {pipeline_mode = #tpu.pipeline_mode<synchronous>, transform_indices = @transform_4, window_bounds = array<i64: 32, 8>}, {pipeline_mode = #tpu.pipeline_mode<synchronous>, transform_indices = @transform_5, window_bounds = array<i64: 8, 32>}, {transform_indices = @transform_6, window_bounds = array<i64: 1, 8, 128>}]} {
    %c0 = arith.constant 0 : index
    %c0_0 = arith.constant 0 : index
    %0 = vector.load %arg5[%c0, %c0_0] : memref<32x16xf32, #tpu.memory_space<vmem>>, vector<32x16xf32>
    %c0_1 = arith.constant 0 : index
    %c0_2 = arith.constant 0 : index
    %c0_3 = arith.constant 0 : index
    %1 = vector.load %arg2[%c0_1, %c0_2, %c0_3] : memref<1x8x128xf32, #tpu.memory_space<vmem>>, vector<1x8x128xf32>
    %2 = vector.shape_cast %1 : vector<1x8x128xf32> to vector<8x128xf32>
    %c0_4 = arith.constant 0 : index
    %c0_5 = arith.constant 0 : index
    %c0_6 = arith.constant 0 : index
    %c0_7 = arith.constant 0 : index
    %3 = vector.load %arg3[%c0_4, %c0_5, %c0_6, %c0_7] : memref<1x1x8x16xf32, #tpu.memory_space<vmem>>, vector<1x1x8x16xf32>
    %4 = vector.shape_cast %3 : vector<1x1x8x16xf32> to vector<8x16xf32>
    %c0_8 = arith.constant 0 : index
    %c0_9 = arith.constant 0 : index
    %c0_10 = arith.constant 0 : index
    %c0_11 = arith.constant 0 : index
    %5 = vector.load %arg4[%c0_8, %c0_9, %c0_10, %c0_11] : memref<1x1x8x16xf32, #tpu.memory_space<vmem>>, vector<1x1x8x16xf32>
    %6 = vector.shape_cast %5 : vector<1x1x8x16xf32> to vector<8x16xf32>
    %cst = arith.constant 0.000000e+00 : f32
    %7 = vector.broadcast %cst : f32 to vector<8x96xf32>
    %8 = tpu.concatenate %4, %2, %6, %7 in 1 : vector<8x16xf32>, vector<8x128xf32>, vector<8x16xf32>, vector<8x96xf32> -> vector<8x256xf32>
    %9 = tpu.iota {dimensions = array<i32: 1>} : vector<1x256xi32>
    %c16_i32 = arith.constant 16 : i32
    %c0_i32 = arith.constant 0 : i32
    %10 = arith.cmpi eq, %c16_i32, %c0_i32 : i32
    %c1_i32 = arith.constant 1 : i32
    %11 = arith.select %10, %c1_i32, %c16_i32 : i32
    %12 = vector.broadcast %11 : i32 to vector<1x256xi32>
    %13 = arith.remsi %9, %12 : vector<1x256xi32>
    %c0_i32_12 = arith.constant 0 : i32
    %14 = vector.broadcast %c0_i32_12 : i32 to vector<1x256xi32>
    %15 = arith.cmpi ne, %13, %14 : vector<1x256xi32>
    %c0_i32_13 = arith.constant 0 : i32
    %16 = vector.broadcast %c0_i32_13 : i32 to vector<1x256xi32>
    %17 = arith.cmpi slt, %13, %16 : vector<1x256xi32>
    %c0_i32_14 = arith.constant 0 : i32
    %18 = arith.cmpi slt, %11, %c0_i32_14 : i32
    %19 = vector.broadcast %18 : i1 to vector<1x256xi1>
    %20 = vector.broadcast %19 : vector<1x256xi1> to vector<1x256xi1>
    %21 = arith.xori %17, %20 : vector<1x256xi1>
    %22 = arith.andi %21, %15 : vector<1x256xi1>
    %23 = vector.broadcast %11 : i32 to vector<1x256xi32>
    %24 = arith.addi %13, %23 : vector<1x256xi32>
    %25 = arith.select %22, %24, %13 : vector<1x256xi1>, vector<1x256xi32>
    %26 = vector.extract_strided_slice %0 {offsets = [0, 9], sizes = [32, 1], strides = [1, 1]} : vector<32x16xf32> to vector<32x1xf32>
    %c0_15 = arith.constant 0 : index
    %c0_16 = arith.constant 0 : index
    %27 = vector.load %arg6[%c0_15, %c0_16] : memref<32x8xbf16, #tpu.memory_space<vmem>>, vector<32x8xbf16>
    %28 = arith.truncf %8 : vector<8x256xf32> to vector<8x256xbf16>
    %cst_17 = arith.constant dense<0.000000e+00> : vector<32x256xf32>
    %29 = tpu.matmul %27, %28, %cst_17 {dimension_numbers = #tpu.dot_dimension_numbers<[1], [0], [0], [1], [0, 0, 1, 1], [], []>} : vector<32x8xbf16>, vector<8x256xbf16>, vector<32x256xf32> -> vector<32x256xf32>
    %30 = vector.broadcast %26 : vector<32x1xf32> to vector<32x256xf32>
    %31 = arith.addf %29, %30 : vector<32x256xf32>
    %cst_18 = arith.constant 0.000000e+00 : f32
    %cst_19 = arith.constant 6.000000e+00 : f32
    %32 = vector.broadcast %cst_18 : f32 to vector<32x256xf32>
    %33 = arith.maximumf %32, %31 : vector<32x256xf32>
    %34 = vector.broadcast %cst_19 : f32 to vector<32x256xf32>
    %35 = arith.minimumf %34, %33 : vector<32x256xf32>
    %c0_i32_20 = arith.constant 0 : i32
    %36 = arith.cmpi sgt, %arg0, %c0_i32_20 : i32
    %37 = arith.extui %36 : i1 to i32
    %38 = arith.sitofp %37 : i32 to f32
    %c1_i32_21 = arith.constant 1 : i32
    %39 = arith.cmpi slt, %arg0, %c1_i32_21 : i32
    %40 = arith.extui %39 : i1 to i32
    %41 = arith.sitofp %40 : i32 to f32
    %c16_i32_22 = arith.constant 16 : i32
    %42 = vector.broadcast %c16_i32_22 : i32 to vector<1x256xi32>
    %43 = arith.cmpi slt, %9, %42 : vector<1x256xi32>
    %c144_i32 = arith.constant 144 : i32
    %44 = vector.broadcast %c144_i32 : i32 to vector<1x256xi32>
    %45 = arith.cmpi sge, %9, %44 : vector<1x256xi32>
    %cst_23 = arith.constant 1.000000e+00 : f32
    %46 = vector.broadcast %41 : f32 to vector<1x256xf32>
    %47 = vector.broadcast %cst_23 : f32 to vector<1x256xf32>
    %48 = arith.select %45, %46, %47 : vector<1x256xi1>, vector<1x256xf32>
    %49 = vector.broadcast %38 : f32 to vector<1x256xf32>
    %50 = arith.select %43, %49, %48 : vector<1x256xi1>, vector<1x256xf32>
    %51 = vector.broadcast %50 : vector<1x256xf32> to vector<32x256xf32>
    %52 = arith.mulf %35, %51 : vector<32x256xf32>
    %c0_i32_24 = arith.constant 0 : i32
    %53 = vector.broadcast %c0_i32_24 : i32 to vector<1x256xi32>
    %54 = arith.cmpi ne, %25, %53 : vector<1x256xi32>
    %55 = arith.extui %54 : vector<1x256xi1> to vector<1x256xi32>
    %56 = arith.sitofp %55 : vector<1x256xi32> to vector<1x256xf32>
    %c15_i32 = arith.constant 15 : i32
    %57 = vector.broadcast %c15_i32 : i32 to vector<1x256xi32>
    %58 = arith.cmpi ne, %25, %57 : vector<1x256xi32>
    %59 = arith.extui %58 : vector<1x256xi1> to vector<1x256xi32>
    %60 = arith.sitofp %59 : vector<1x256xi32> to vector<1x256xf32>
    %61 = vector.extract_strided_slice %0 {offsets = [0, 0], sizes = [32, 1], strides = [1, 1]} : vector<32x16xf32> to vector<32x1xf32>
    %c17_i32 = arith.constant 17 : i32
    %62 = tpu.dynamic_rotate %52 by %c17_i32 dim 1 : vector<32x256xf32>, i32 -> vector<32x256xf32>
    %63 = vector.broadcast %61 : vector<32x1xf32> to vector<32x256xf32>
    %64 = arith.mulf %62, %63 : vector<32x256xf32>
    %65 = vector.broadcast %56 : vector<1x256xf32> to vector<32x256xf32>
    %66 = arith.mulf %64, %65 : vector<32x256xf32>
    %67 = vector.extract_strided_slice %0 {offsets = [0, 1], sizes = [32, 1], strides = [1, 1]} : vector<32x16xf32> to vector<32x1xf32>
    %c16_i32_25 = arith.constant 16 : i32
    %68 = tpu.dynamic_rotate %52 by %c16_i32_25 dim 1 : vector<32x256xf32>, i32 -> vector<32x256xf32>
    %69 = vector.broadcast %67 : vector<32x1xf32> to vector<32x256xf32>
    %70 = arith.mulf %68, %69 : vector<32x256xf32>
    %71 = arith.addf %66, %70 : vector<32x256xf32>
    %72 = vector.extract_strided_slice %0 {offsets = [0, 2], sizes = [32, 1], strides = [1, 1]} : vector<32x16xf32> to vector<32x1xf32>
    %c15_i32_26 = arith.constant 15 : i32
    %73 = tpu.dynamic_rotate %52 by %c15_i32_26 dim 1 : vector<32x256xf32>, i32 -> vector<32x256xf32>
    %74 = vector.broadcast %72 : vector<32x1xf32> to vector<32x256xf32>
    %75 = arith.mulf %73, %74 : vector<32x256xf32>
    %76 = vector.broadcast %60 : vector<1x256xf32> to vector<32x256xf32>
    %77 = arith.mulf %75, %76 : vector<32x256xf32>
    %78 = arith.addf %71, %77 : vector<32x256xf32>
    %79 = vector.extract_strided_slice %0 {offsets = [0, 3], sizes = [32, 1], strides = [1, 1]} : vector<32x16xf32> to vector<32x1xf32>
    %c1_i32_27 = arith.constant 1 : i32
    %80 = tpu.dynamic_rotate %52 by %c1_i32_27 dim 1 : vector<32x256xf32>, i32 -> vector<32x256xf32>
    %81 = vector.broadcast %79 : vector<32x1xf32> to vector<32x256xf32>
    %82 = arith.mulf %80, %81 : vector<32x256xf32>
    %83 = vector.broadcast %56 : vector<1x256xf32> to vector<32x256xf32>
    %84 = arith.mulf %82, %83 : vector<32x256xf32>
    %85 = arith.addf %78, %84 : vector<32x256xf32>
    %86 = vector.extract_strided_slice %0 {offsets = [0, 4], sizes = [32, 1], strides = [1, 1]} : vector<32x16xf32> to vector<32x1xf32>
    %87 = vector.broadcast %86 : vector<32x1xf32> to vector<32x256xf32>
    %88 = arith.mulf %52, %87 : vector<32x256xf32>
    %89 = arith.addf %85, %88 : vector<32x256xf32>
    %90 = vector.extract_strided_slice %0 {offsets = [0, 5], sizes = [32, 1], strides = [1, 1]} : vector<32x16xf32> to vector<32x1xf32>
    %c255_i32 = arith.constant 255 : i32
    %91 = tpu.dynamic_rotate %52 by %c255_i32 dim 1 : vector<32x256xf32>, i32 -> vector<32x256xf32>
    %92 = vector.broadcast %90 : vector<32x1xf32> to vector<32x256xf32>
    %93 = arith.mulf %91, %92 : vector<32x256xf32>
    %94 = vector.broadcast %60 : vector<1x256xf32> to vector<32x256xf32>
    %95 = arith.mulf %93, %94 : vector<32x256xf32>
    %96 = arith.addf %89, %95 : vector<32x256xf32>
    %97 = vector.extract_strided_slice %0 {offsets = [0, 6], sizes = [32, 1], strides = [1, 1]} : vector<32x16xf32> to vector<32x1xf32>
    %c241_i32 = arith.constant 241 : i32
    %98 = tpu.dynamic_rotate %52 by %c241_i32 dim 1 : vector<32x256xf32>, i32 -> vector<32x256xf32>
    %99 = vector.broadcast %97 : vector<32x1xf32> to vector<32x256xf32>
    %100 = arith.mulf %98, %99 : vector<32x256xf32>
    %101 = vector.broadcast %56 : vector<1x256xf32> to vector<32x256xf32>
    %102 = arith.mulf %100, %101 : vector<32x256xf32>
    %103 = arith.addf %96, %102 : vector<32x256xf32>
    %104 = vector.extract_strided_slice %0 {offsets = [0, 7], sizes = [32, 1], strides = [1, 1]} : vector<32x16xf32> to vector<32x1xf32>
    %c240_i32 = arith.constant 240 : i32
    %105 = tpu.dynamic_rotate %52 by %c240_i32 dim 1 : vector<32x256xf32>, i32 -> vector<32x256xf32>
    %106 = vector.broadcast %104 : vector<32x1xf32> to vector<32x256xf32>
    %107 = arith.mulf %105, %106 : vector<32x256xf32>
    %108 = arith.addf %103, %107 : vector<32x256xf32>
    %109 = vector.extract_strided_slice %0 {offsets = [0, 8], sizes = [32, 1], strides = [1, 1]} : vector<32x16xf32> to vector<32x1xf32>
    %c239_i32 = arith.constant 239 : i32
    %110 = tpu.dynamic_rotate %52 by %c239_i32 dim 1 : vector<32x256xf32>, i32 -> vector<32x256xf32>
    %111 = vector.broadcast %109 : vector<32x1xf32> to vector<32x256xf32>
    %112 = arith.mulf %110, %111 : vector<32x256xf32>
    %113 = vector.broadcast %60 : vector<1x256xf32> to vector<32x256xf32>
    %114 = arith.mulf %112, %113 : vector<32x256xf32>
    %115 = arith.addf %108, %114 : vector<32x256xf32>
    %116 = vector.extract_strided_slice %0 {offsets = [0, 10], sizes = [32, 1], strides = [1, 1]} : vector<32x16xf32> to vector<32x1xf32>
    %117 = vector.broadcast %116 : vector<32x1xf32> to vector<32x256xf32>
    %118 = arith.addf %115, %117 : vector<32x256xf32>
    %cst_28 = arith.constant 0.000000e+00 : f32
    %cst_29 = arith.constant 6.000000e+00 : f32
    %119 = vector.broadcast %cst_28 : f32 to vector<32x256xf32>
    %120 = arith.maximumf %119, %118 : vector<32x256xf32>
    %121 = vector.broadcast %cst_29 : f32 to vector<32x256xf32>
    %122 = arith.minimumf %121, %120 : vector<32x256xf32>
    %c0_30 = arith.constant 0 : index
    %c0_31 = arith.constant 0 : index
    %123 = vector.load %arg7[%c0_30, %c0_31] : memref<8x32xbf16, #tpu.memory_space<vmem>>, vector<8x32xbf16>
    %124 = arith.truncf %122 : vector<32x256xf32> to vector<32x256xbf16>
    %cst_32 = arith.constant dense<0.000000e+00> : vector<8x256xf32>
    %125 = tpu.matmul %123, %124, %cst_32 {dimension_numbers = #tpu.dot_dimension_numbers<[1], [0], [0], [1], [0, 0, 1, 1], [], []>} : vector<8x32xbf16>, vector<32x256xbf16>, vector<8x256xf32> -> vector<8x256xf32>
    %126 = vector.extract_strided_slice %0 {offsets = [0, 11], sizes = [8, 1], strides = [1, 1]} : vector<32x16xf32> to vector<8x1xf32>
    %c240_i32_33 = arith.constant 240 : i32
    %127 = tpu.dynamic_rotate %125 by %c240_i32_33 dim 1 : vector<8x256xf32>, i32 -> vector<8x256xf32>
    %128 = vector.extract_strided_slice %127 {offsets = [0, 0], sizes = [8, 128], strides = [1, 1]} : vector<8x256xf32> to vector<8x128xf32>
    %129 = vector.broadcast %126 : vector<8x1xf32> to vector<8x128xf32>
    %130 = arith.addf %128, %129 : vector<8x128xf32>
    %131 = arith.addf %130, %2 : vector<8x128xf32>
    %c0_34 = arith.constant 0 : index
    %c0_35 = arith.constant 0 : index
    %c0_36 = arith.constant 0 : index
    %132 = vector.load %arg8[%c0_34, %c0_35, %c0_36] : memref<1x8x128xf32, #tpu.memory_space<vmem>>, vector<1x8x128xf32>
    %133 = vector.shape_cast %132 : vector<1x8x128xf32> to vector<8x128xf32>
    %134 = vector.shape_cast %131 : vector<8x128xf32> to vector<1x8x128xf32>
    tpu.vector_store %arg8[%c0_34, %c0_35, %c0_36], %134 {strides = array<i32>} : memref<1x8x128xf32, #tpu.memory_space<vmem>>, vector<1x8x128xf32>,
    return
  }
  func.func @transform_0(%arg0: i32, %arg1: i32) -> (i32, i32, i32) {
    %c0_i32 = arith.constant 0 : i32
    %c0_i32_0 = arith.constant 0 : i32
    return %arg1, %c0_i32, %arg0 : i32, i32, i32
  }
  func.func @transform_1(%arg0: i32, %arg1: i32) -> (i32, i32, i32, i32) {
    %c0_i32 = arith.constant 0 : i32
    %c0_i32_0 = arith.constant 0 : i32
    %c0_i32_1 = arith.constant 0 : i32
    return %arg1, %arg0, %c0_i32, %c0_i32_0 : i32, i32, i32, i32
  }
  func.func @transform_2(%arg0: i32, %arg1: i32) -> (i32, i32, i32, i32) {
    %c0_i32 = arith.constant 0 : i32
    %c0_i32_0 = arith.constant 0 : i32
    %c0_i32_1 = arith.constant 0 : i32
    return %arg1, %arg0, %c0_i32, %c0_i32_0 : i32, i32, i32, i32
  }
  func.func @transform_3(%arg0: i32, %arg1: i32) -> (i32, i32) {
    %c0_i32 = arith.constant 0 : i32
    %c0_i32_0 = arith.constant 0 : i32
    %c0_i32_1 = arith.constant 0 : i32
    return %c0_i32, %c0_i32_0 : i32, i32
  }
  func.func @transform_4(%arg0: i32, %arg1: i32) -> (i32, i32) {
    %c0_i32 = arith.constant 0 : i32
    %c0_i32_0 = arith.constant 0 : i32
    %c0_i32_1 = arith.constant 0 : i32
    return %c0_i32, %c0_i32_0 : i32, i32
  }
  func.func @transform_5(%arg0: i32, %arg1: i32) -> (i32, i32) {
    %c0_i32 = arith.constant 0 : i32
    %c0_i32_0 = arith.constant 0 : i32
    %c0_i32_1 = arith.constant 0 : i32
    return %c0_i32, %c0_i32_0 : i32, i32
  }
  func.func @transform_6(%arg0: i32, %arg1: i32) -> (i32, i32, i32) {
    %c0_i32 = arith.constant 0 : i32
    %c0_i32_0 = arith.constant 0 : i32
    return %arg1, %c0_i32, %arg0 : i32, i32, i32
  }
}

module attributes {stable_mosaic.version = 11 : i64} {
  func.func @kernel(%arg0: i32, %arg1: i32, %arg2: memref<1x8x128xf32, #tpu.memory_space<vmem>>, %arg3: memref<1x1x8x16xf32, #tpu.memory_space<vmem>>, %arg4: memref<1x1x8x16xf32, #tpu.memory_space<vmem>>, %arg5: memref<32x16xf32, #tpu.memory_space<vmem>>, %arg6: memref<32x8xbf16, #tpu.memory_space<vmem>>, %arg7: memref<8x32xbf16, #tpu.memory_space<vmem>>, %arg8: memref<1x8x128xf32, #tpu.memory_space<vmem>>) attributes {dimension_semantics = [#tpu.dimension_semantics<parallel>, #tpu.dimension_semantics<parallel>], iteration_bounds = array<i64: 2, 2>, scalar_prefetch = 0 : i64, scratch_operands = 0 : i64, tpu.core_type = #tpu.core_type<tc>, window_params = [{transform_indices = @transform_0, window_bounds = array<i64: 1, 8, 128>}, {transform_indices = @transform_1, window_bounds = array<i64: 1, 1, 8, 16>}, {transform_indices = @transform_2, window_bounds = array<i64: 1, 1, 8, 16>}, {pipeline_mode = #tpu.pipeline_mode<synchronous>, transform_indices = @transform_3, window_bounds = array<i64: 32, 16>}, {pipeline_mode = #tpu.pipeline_mode<synchronous>, transform_indices = @transform_4, window_bounds = array<i64: 32, 8>}, {pipeline_mode = #tpu.pipeline_mode<synchronous>, transform_indices = @transform_5, window_bounds = array<i64: 8, 32>}, {transform_indices = @transform_6, window_bounds = array<i64: 1, 8, 128>}]} {
    %c0 = arith.constant 0 : index
    %c0_0 = arith.constant 0 : index
    %0 = vector.load %arg5[%c0, %c0_0] : memref<32x16xf32, #tpu.memory_space<vmem>>, vector<32x16xf32>
    %c0_1 = arith.constant 0 : index
    %c0_2 = arith.constant 0 : index
    %c0_3 = arith.constant 0 : index
    %1 = vector.load %arg2[%c0_1, %c0_2, %c0_3] : memref<1x8x128xf32, #tpu.memory_space<vmem>>, vector<1x8x128xf32>
    %2 = vector.shape_cast %1 : vector<1x8x128xf32> to vector<8x128xf32>
    %c0_4 = arith.constant 0 : index
    %c0_5 = arith.constant 0 : index
    %c0_6 = arith.constant 0 : index
    %c0_7 = arith.constant 0 : index
    %3 = vector.load %arg3[%c0_4, %c0_5, %c0_6, %c0_7] : memref<1x1x8x16xf32, #tpu.memory_space<vmem>>, vector<1x1x8x16xf32>
    %4 = vector.shape_cast %3 : vector<1x1x8x16xf32> to vector<8x16xf32>
    %c0_8 = arith.constant 0 : index
    %c0_9 = arith.constant 0 : index
    %c0_10 = arith.constant 0 : index
    %c0_11 = arith.constant 0 : index
    %5 = vector.load %arg4[%c0_8, %c0_9, %c0_10, %c0_11] : memref<1x1x8x16xf32, #tpu.memory_space<vmem>>, vector<1x1x8x16xf32>
    %6 = vector.shape_cast %5 : vector<1x1x8x16xf32> to vector<8x16xf32>
    %cst = arith.constant 0.000000e+00 : f32
    %7 = vector.broadcast %cst : f32 to vector<8x96xf32>
    %8 = tpu.concatenate %4, %2, %6, %7 in 1 : vector<8x16xf32>, vector<8x128xf32>, vector<8x16xf32>, vector<8x96xf32> -> vector<8x256xf32>
    %9 = tpu.iota {dimensions = array<i32: 1>} : vector<1x256xi32>
    %c16_i32 = arith.constant 16 : i32
    %c0_i32 = arith.constant 0 : i32
    %10 = arith.cmpi eq, %c16_i32, %c0_i32 : i32
    %c1_i32 = arith.constant 1 : i32
    %11 = arith.select %10, %c1_i32, %c16_i32 : i32
    %12 = vector.broadcast %11 : i32 to vector<1x256xi32>
    %13 = arith.remsi %9, %12 : vector<1x256xi32>
    %c0_i32_12 = arith.constant 0 : i32
    %14 = vector.broadcast %c0_i32_12 : i32 to vector<1x256xi32>
    %15 = arith.cmpi ne, %13, %14 : vector<1x256xi32>
    %c0_i32_13 = arith.constant 0 : i32
    %16 = vector.broadcast %c0_i32_13 : i32 to vector<1x256xi32>
    %17 = arith.cmpi slt, %13, %16 : vector<1x256xi32>
    %c0_i32_14 = arith.constant 0 : i32
    %18 = arith.cmpi slt, %11, %c0_i32_14 : i32
    %19 = vector.broadcast %18 : i1 to vector<1x256xi1>
    %20 = vector.broadcast %19 : vector<1x256xi1> to vector<1x256xi1>
    %21 = arith.xori %17, %20 : vector<1x256xi1>
    %22 = arith.andi %21, %15 : vector<1x256xi1>
    %23 = vector.broadcast %11 : i32 to vector<1x256xi32>
    %24 = arith.addi %13, %23 : vector<1x256xi32>
    %25 = arith.select %22, %24, %13 : vector<1x256xi1>, vector<1x256xi32>
    %26 = vector.extract_strided_slice %0 {offsets = [0, 9], sizes = [32, 1], strides = [1, 1]} : vector<32x16xf32> to vector<32x1xf32>
    %c0_15 = arith.constant 0 : index
    %c0_16 = arith.constant 0 : index
    %27 = vector.load %arg6[%c0_15, %c0_16] : memref<32x8xbf16, #tpu.memory_space<vmem>>, vector<32x8xbf16>
    %28 = arith.truncf %8 : vector<8x256xf32> to vector<8x256xbf16>
    %cst_17 = arith.constant dense<0.000000e+00> : vector<32x256xf32>
    %29 = tpu.matmul %27, %28, %cst_17 {dimension_numbers = #tpu.dot_dimension_numbers<[1], [0], [0], [1], [0, 0, 1, 1], [], []>} : vector<32x8xbf16>, vector<8x256xbf16>, vector<32x256xf32> -> vector<32x256xf32>
    %30 = vector.broadcast %26 : vector<32x1xf32> to vector<32x256xf32>
    %31 = arith.addf %29, %30 : vector<32x256xf32>
    %cst_18 = arith.constant 0.000000e+00 : f32
    %cst_19 = arith.constant 6.000000e+00 : f32
    %32 = vector.broadcast %cst_18 : f32 to vector<32x256xf32>
    %33 = arith.maximumf %32, %31 : vector<32x256xf32>
    %34 = vector.broadcast %cst_19 : f32 to vector<32x256xf32>
    %35 = arith.minimumf %34, %33 : vector<32x256xf32>
    %c0_i32_20 = arith.constant 0 : i32
    %36 = arith.cmpi sgt, %arg0, %c0_i32_20 : i32
    %37 = arith.extui %36 : i1 to i32
    %38 = arith.sitofp %37 : i32 to f32
    %c1_i32_21 = arith.constant 1 : i32
    %39 = arith.cmpi slt, %arg0, %c1_i32_21 : i32
    %40 = arith.extui %39 : i1 to i32
    %41 = arith.sitofp %40 : i32 to f32
    %c16_i32_22 = arith.constant 16 : i32
    %42 = vector.broadcast %c16_i32_22 : i32 to vector<1x256xi32>
    %43 = arith.cmpi slt, %9, %42 : vector<1x256xi32>
    %c144_i32 = arith.constant 144 : i32
    %44 = vector.broadcast %c144_i32 : i32 to vector<1x256xi32>
    %45 = arith.cmpi sge, %9, %44 : vector<1x256xi32>
    %cst_23 = arith.constant 1.000000e+00 : f32
    %46 = vector.broadcast %41 : f32 to vector<1x256xf32>
    %47 = vector.broadcast %cst_23 : f32 to vector<1x256xf32>
    %48 = arith.select %45, %46, %47 : vector<1x256xi1>, vector<1x256xf32>
    %49 = vector.broadcast %38 : f32 to vector<1x256xf32>
    %50 = arith.select %43, %49, %48 : vector<1x256xi1>, vector<1x256xf32>
    %51 = vector.broadcast %50 : vector<1x256xf32> to vector<32x256xf32>
    %52 = arith.mulf %35, %51 : vector<32x256xf32>
    %c0_i32_24 = arith.constant 0 : i32
    %53 = vector.broadcast %c0_i32_24 : i32 to vector<1x256xi32>
    %54 = arith.cmpi ne, %25, %53 : vector<1x256xi32>
    %55 = arith.extui %54 : vector<1x256xi1> to vector<1x256xi32>
    %56 = arith.sitofp %55 : vector<1x256xi32> to vector<1x256xf32>
    %c15_i32 = arith.constant 15 : i32
    %57 = vector.broadcast %c15_i32 : i32 to vector<1x256xi32>
    %58 = arith.cmpi ne, %25, %57 : vector<1x256xi32>
    %59 = arith.extui %58 : vector<1x256xi1> to vector<1x256xi32>
    %60 = arith.sitofp %59 : vector<1x256xi32> to vector<1x256xf32>
    %61 = vector.extract_strided_slice %0 {offsets = [0, 0], sizes = [32, 1], strides = [1, 1]} : vector<32x16xf32> to vector<32x1xf32>
    %c17_i32 = arith.constant 17 : i32
    %62 = tpu.dynamic_rotate %52 by %c17_i32 dim 1 : vector<32x256xf32>, i32 -> vector<32x256xf32>
    %63 = vector.broadcast %61 : vector<32x1xf32> to vector<32x256xf32>
    %64 = arith.mulf %62, %63 : vector<32x256xf32>
    %65 = vector.broadcast %56 : vector<1x256xf32> to vector<32x256xf32>
    %66 = arith.mulf %64, %65 : vector<32x256xf32>
    %67 = vector.extract_strided_slice %0 {offsets = [0, 1], sizes = [32, 1], strides = [1, 1]} : vector<32x16xf32> to vector<32x1xf32>
    %c16_i32_25 = arith.constant 16 : i32
    %68 = tpu.dynamic_rotate %52 by %c16_i32_25 dim 1 : vector<32x256xf32>, i32 -> vector<32x256xf32>
    %69 = vector.broadcast %67 : vector<32x1xf32> to vector<32x256xf32>
    %70 = arith.mulf %68, %69 : vector<32x256xf32>
    %71 = arith.addf %66, %70 : vector<32x256xf32>
    %72 = vector.extract_strided_slice %0 {offsets = [0, 2], sizes = [32, 1], strides = [1, 1]} : vector<32x16xf32> to vector<32x1xf32>
    %c15_i32_26 = arith.constant 15 : i32
    %73 = tpu.dynamic_rotate %52 by %c15_i32_26 dim 1 : vector<32x256xf32>, i32 -> vector<32x256xf32>
    %74 = vector.broadcast %72 : vector<32x1xf32> to vector<32x256xf32>
    %75 = arith.mulf %73, %74 : vector<32x256xf32>
    %76 = vector.broadcast %60 : vector<1x256xf32> to vector<32x256xf32>
    %77 = arith.mulf %75, %76 : vector<32x256xf32>
    %78 = arith.addf %71, %77 : vector<32x256xf32>
    %79 = vector.extract_strided_slice %0 {offsets = [0, 3], sizes = [32, 1], strides = [1, 1]} : vector<32x16xf32> to vector<32x1xf32>
    %c1_i32_27 = arith.constant 1 : i32
    %80 = tpu.dynamic_rotate %52 by %c1_i32_27 dim 1 : vector<32x256xf32>, i32 -> vector<32x256xf32>
    %81 = vector.broadcast %79 : vector<32x1xf32> to vector<32x256xf32>
    %82 = arith.mulf %80, %81 : vector<32x256xf32>
    %83 = vector.broadcast %56 : vector<1x256xf32> to vector<32x256xf32>
    %84 = arith.mulf %82, %83 : vector<32x256xf32>
    %85 = arith.addf %78, %84 : vector<32x256xf32>
    %86 = vector.extract_strided_slice %0 {offsets = [0, 4], sizes = [32, 1], strides = [1, 1]} : vector<32x16xf32> to vector<32x1xf32>
    %87 = vector.broadcast %86 : vector<32x1xf32> to vector<32x256xf32>
    %88 = arith.mulf %52, %87 : vector<32x256xf32>
    %89 = arith.addf %85, %88 : vector<32x256xf32>
    %90 = vector.extract_strided_slice %0 {offsets = [0, 5], sizes = [32, 1], strides = [1, 1]} : vector<32x16xf32> to vector<32x1xf32>
    %c255_i32 = arith.constant 255 : i32
    %91 = tpu.dynamic_rotate %52 by %c255_i32 dim 1 : vector<32x256xf32>, i32 -> vector<32x256xf32>
    %92 = vector.broadcast %90 : vector<32x1xf32> to vector<32x256xf32>
    %93 = arith.mulf %91, %92 : vector<32x256xf32>
    %94 = vector.broadcast %60 : vector<1x256xf32> to vector<32x256xf32>
    %95 = arith.mulf %93, %94 : vector<32x256xf32>
    %96 = arith.addf %89, %95 : vector<32x256xf32>
    %97 = vector.extract_strided_slice %0 {offsets = [0, 6], sizes = [32, 1], strides = [1, 1]} : vector<32x16xf32> to vector<32x1xf32>
    %c241_i32 = arith.constant 241 : i32
    %98 = tpu.dynamic_rotate %52 by %c241_i32 dim 1 : vector<32x256xf32>, i32 -> vector<32x256xf32>
    %99 = vector.broadcast %97 : vector<32x1xf32> to vector<32x256xf32>
    %100 = arith.mulf %98, %99 : vector<32x256xf32>
    %101 = vector.broadcast %56 : vector<1x256xf32> to vector<32x256xf32>
    %102 = arith.mulf %100, %101 : vector<32x256xf32>
    %103 = arith.addf %96, %102 : vector<32x256xf32>
    %104 = vector.extract_strided_slice %0 {offsets = [0, 7], sizes = [32, 1], strides = [1, 1]} : vector<32x16xf32> to vector<32x1xf32>
    %c240_i32 = arith.constant 240 : i32
    %105 = tpu.dynamic_rotate %52 by %c240_i32 dim 1 : vector<32x256xf32>, i32 -> vector<32x256xf32>
    %106 = vector.broadcast %104 : vector<32x1xf32> to vector<32x256xf32>
    %107 = arith.mulf %105, %106 : vector<32x256xf32>
    %108 = arith.addf %103, %107 : vector<32x256xf32>
    %109 = vector.extract_strided_slice %0 {offsets = [0, 8], sizes = [32, 1], strides = [1, 1]} : vector<32x16xf32> to vector<32x1xf32>
    %c239_i32 = arith.constant 239 : i32
    %110 = tpu.dynamic_rotate %52 by %c239_i32 dim 1 : vector<32x256xf32>, i32 -> vector<32x256xf32>
    %111 = vector.broadcast %109 : vector<32x1xf32> to vector<32x256xf32>
    %112 = arith.mulf %110, %111 : vector<32x256xf32>
    %113 = vector.broadcast %60 : vector<1x256xf32> to vector<32x256xf32>
    %114 = arith.mulf %112, %113 : vector<32x256xf32>
    %115 = arith.addf %108, %114 : vector<32x256xf32>
    %116 = vector.extract_strided_slice %0 {offsets = [0, 10], sizes = [32, 1], strides = [1, 1]} : vector<32x16xf32> to vector<32x1xf32>
    %117 = vector.broadcast %116 : vector<32x1xf32> to vector<32x256xf32>
    %118 = arith.addf %115, %117 : vector<32x256xf32>
    %cst_28 = arith.constant 0.000000e+00 : f32
    %cst_29 = arith.constant 6.000000e+00 : f32
    %119 = vector.broadcast %cst_28 : f32 to vector<32x256xf32>
    %120 = arith.maximumf %119, %118 : vector<32x256xf32>
    %121 = vector.broadcast %cst_29 : f32 to vector<32x256xf32>
    %122 = arith.minimumf %121, %120 : vector<32x256xf32>
    %c0_30 = arith.constant 0 : index
    %c0_31 = arith.constant 0 : index
    %123 = vector.load %arg7[%c0_30, %c0_31] : memref<8x32xbf16, #tpu.memory_space<vmem>>, vector<8x32xbf16>
    %124 = arith.truncf %122 : vector<32x256xf32> to vector<32x256xbf16>
    %cst_32 = arith.constant dense<0.000000e+00> : vector<8x256xf32>
    %125 = tpu.matmul %123, %124, %cst_32 {dimension_numbers = #tpu.dot_dimension_numbers<[1], [0], [0], [1], [0, 0, 1, 1], [], []>} : vector<8x32xbf16>, vector<32x256xbf16>, vector<8x256xf32> -> vector<8x256xf32>
    %126 = vector.extract_strided_slice %0 {offsets = [0, 11], sizes = [8, 1], strides = [1, 1]} : vector<32x16xf32> to vector<8x1xf32>
    %c240_i32_33 = arith.constant 240 : i32
    %127 = tpu.dynamic_rotate %125 by %c240_i32_33 dim 1 : vector<8x256xf32>, i32 -> vector<8x256xf32>
    %128 = vector.extract_strided_slice %127 {offsets = [0, 0], sizes = [8, 128], strides = [1, 1]} : vector<8x256xf32> to vector<8x128xf32>
    %129 = vector.broadcast %126 : vector<8x1xf32> to vector<8x128xf32>
    %130 = arith.addf %128, %129 : vector<8x128xf32>
    %131 = arith.addf %130, %2 : vector<8x128xf32>
    %c0_34 = arith.constant 0 : index
    %c0_35 = arith.constant 0 : index
    %c0_36 = arith.constant 0 : index
    %132 = vector.load %arg8[%c0_34, %c0_35, %c0_36] : memref<1x8x128xf32, #tpu.memory_space<vmem>>, vector<1x8x128xf32>
    %133 = vector.shape_cast %132 : vector<1x8x128xf32> to vector<8x128xf32>
    %134 = vector.shape_cast %131 : vector<8x128xf32> to vector<1x8x128xf32>
    tpu.vector_store %arg8[%c0_34, %c0_35, %c0_36], %134 {strides = array<i32>} : memref<1x8x128xf32, #tpu.memory_space<vmem>>, vector<1x8x128xf32>,
    return
  }
  func.func @transform_0(%arg0: i32, %arg1: i32) -> (i32, i32, i32) {
    %c0_i32 = arith.constant 0 : i32
    %c0_i32_0 = arith.constant 0 : i32
    return %arg1, %c0_i32, %arg0 : i32, i32, i32
  }
  func.func @transform_1(%arg0: i32, %arg1: i32) -> (i32, i32, i32, i32) {
    %c0_i32 = arith.constant 0 : i32
    %c0_i32_0 = arith.constant 0 : i32
    %c0_i32_1 = arith.constant 0 : i32
    return %arg1, %arg0, %c0_i32, %c0_i32_0 : i32, i32, i32, i32
  }
  func.func @transform_2(%arg0: i32, %arg1: i32) -> (i32, i32, i32, i32) {
    %c0_i32 = arith.constant 0 : i32
    %c0_i32_0 = arith.constant 0 : i32
    %c0_i32_1 = arith.constant 0 : i32
    return %arg1, %arg0, %c0_i32, %c0_i32_0 : i32, i32, i32, i32
  }
  func.func @transform_3(%arg0: i32, %arg1: i32) -> (i32, i32) {
    %c0_i32 = arith.constant 0 : i32
    %c0_i32_0 = arith.constant 0 : i32
    %c0_i32_1 = arith.constant 0 : i32
    return %c0_i32, %c0_i32_0 : i32, i32
  }
  func.func @transform_4(%arg0: i32, %arg1: i32) -> (i32, i32) {
    %c0_i32 = arith.constant 0 : i32
    %c0_i32_0 = arith.constant 0 : i32
    %c0_i32_1 = arith.constant 0 : i32
    return %c0_i32, %c0_i32_0 : i32, i32
  }
  func.func @transform_5(%arg0: i32, %arg1: i32) -> (i32, i32) {
    %c0_i32 = arith.constant 0 : i32
    %c0_i32_0 = arith.constant 0 : i32
    %c0_i32_1 = arith.constant 0 : i32
    return %c0_i32, %c0_i32_0 : i32, i32
  }
  func.func @transform_6(%arg0: i32, %arg1: i32) -> (i32, i32, i32) {
    %c0_i32 = arith.constant 0 : i32
    %c0_i32_0 = arith.constant 0 : i32
    return %arg1, %c0_i32, %arg0 : i32, i32, i32
  }
}

</mosaic_0001>

<llo_original>
// kernel: tpu_custom_call.1
$region0: #{tpu_custom_call.1}
  #allocation0 [shape = 'u32[]', space=smem, size = 0x4, offset = 0x4, fixed_abs, tag = 'smem constant byte address 0x4 - core index']
  #allocation1 [shape = 'u32[72,128]{1,0:T(1,128)}', space=vmem, size = 0x9000, scoped, tag = 'internal scratch']
  %s0 = inlined_call_operand.vmem [shape: f32[2,8,256], index: 0, kind: input, shape index: {}]
  %s1 = inlined_call_operand.hbm [shape: f32[2,2,8,16], index: 1, kind: input, shape index: {}]
  %s2 = inlined_call_operand.hbm [shape: f32[2,2,8,16], index: 2, kind: input, shape index: {}]
  %s3 = inlined_call_operand.vmem [shape: f32[32,16], index: 3, kind: input, shape index: {}]
  %s4 = inlined_call_operand.vmem [shape: bf16[32,8], index: 4, kind: input, shape index: {}]
  %s5 = inlined_call_operand.vmem [shape: bf16[8,32], index: 5, kind: input, shape index: {}]
  %s6 = inlined_call_operand.hbm [shape: f32[2,8,256], index: 6, kind: output, shape index: {}]
  %s7 = sld [smem:[#allocation0]]
  $region65: #{tpu_custom_call.1} parent=0
    _
  %s9 = ssub.s32 1, %s7
  %s10 = scalar_select 0, %s9, %s7
  $region1: #{tpu_custom_call.1} parent=0
    #allocation2 [shape = 'u8[8192]{0}', space=vmem, size = 0x2000, scoped, tag = 'input window, operand 1']
    #allocation3 [shape = 's32[2]{0}', space=sflag, size = 0x8, scoped, tag = 'scoped memory for tpu_custom_call.1']
    #allocation4 [shape = 's32[2]{0}', space=sflag, size = 0x8, scoped, tag = 'scoped memory for tpu_custom_call.1']
    #allocation5 [shape = 'u8[8192]{0}', space=vmem, size = 0x2000, scoped, tag = 'input window, operand 2']
    #allocation6 [shape = 's32[2]{0}', space=sflag, size = 0x8, scoped, tag = 'scoped memory for tpu_custom_call.1']
    #allocation7 [shape = 'u8[8192]{0}', space=vmem, size = 0x2000, scoped, tag = 'output window, operand 0']
    %11 = vsyncpa [#allocation3], 0
    %s12 = scalar_lea.sflag [#allocation3], 1
    %13 = vsyncpa %s12, 0
    %14 = vsyncpa [#allocation6], 0
    %s15 = scalar_lea.sflag [#allocation6], 1
    %16 = vsyncpa %s15, 0
    %17 = vsyncpa [#allocation4], 0
    %s18 = scalar_lea.sflag [#allocation4], 1
    %19 = vsyncpa %s18, 0
    loop: start=0, step=1, limit=6
    $region2: #{tpu_custom_call.1} parent=1 // loop_pre_header
      _
    $region3: #{tpu_custom_call.1} parent=1 // loop_header
      %s21 = sphi 0, %s25
      %p22 = scmp.ge.s32.totalorder %s21, 6
      %s28 = sphi 0, %s40
      %s29 = sphi 0, %s36
      %s30 = sphi 0, %s28
      %s31 = sphi 0, %s29
      %s32 = sphi 0, %s30
      %s33 = sphi 0, %s31
      %s45 = sphi 0, %s47
      %s48 = sphi 0, %s45
      %s49 = sphi 0, %s48
      %s65 = sphi 0, %s49
      %s73 = sphi 0, %s75
      %s76 = sphi 0, %s73
      %s77 = sphi 0, %s76
      %s93 = sphi 0, %s77
      %s101 = sphi 0, %s103
      %s104 = sphi 0, %s101
      %s105 = sphi 0, %s104
      %s121 = sphi 0, %s105
      %s125 = sphi 0, %s125
      %s127 = sphi 0, %s125
      %s128 = sphi 0, %s127
      %s142 = sphi 0, %s128
      %s146 = sphi 0, %s146
      %s148 = sphi 0, %s146
      %s149 = sphi 0, %s148
      %s163 = sphi 0, %s149
      %s167 = sphi 0, %s167
      %s169 = sphi 0, %s167
      %s170 = sphi 0, %s169
      %s184 = sphi 0, %s170
      %s192 = sphi 0, %s194
      %s195 = sphi 0, %s192
      %s196 = sphi 0, %s195
      %s212 = sphi 0, %s196
    $region4: #{tpu_custom_call.1} parent=1 // loop_header_branch
      %24 = sbr.rel (%p22) target = $region8
    $region5: #{tpu_custom_call.1} parent=1 // loop_body
      %s26 = ssub.s32 %s21, 1
      %s27 = ssub.s32 %s21, 2
      %s34 = sadd.s32 1, %s29
      %p35 = scmp.ge.s32.totalorder %s34, 2
      %s36 = scalar_select %p35, 0, %s34
      %s37 = sadd.s32 1, %s28
      %s38 = scalar_select %p35, %s37, %s28
      %p39 = scmp.ge.s32.totalorder %s38, 2
      %s40 = scalar_select %p39, 0, %s38
      %s41 = ssub.s32 %s29, %s36
      %s42 = ssub.s32 %s28, %s40
      %s43 = sor.u32 %s41, %s42
      %p44 = scmp.eq.s32.totalorder %s43, 0
      %s46 = sadd.s32 %s45, 1
      %s47 = scalar_select %p44, %s45, %s46
      %p50 = pneg %p44
      %p51 = scmp.eq.s32.totalorder %s21, 3
      %p52 = por %p50, %p51
      %p53 = scmp.ne.s32.totalorder %s45, %s48
      %p54 = scmp.eq.s32.totalorder %s21, 0
      %p55 = por %p53, %p54
      %p56 = scmp.ne.s32.totalorder %s45, %s48
      %p57 = scmp.eq.s32.totalorder %s26, 3
      %p58 = por %p56, %p57
      %p59 = scmp.ne.s32.totalorder %s48, %s49
      %p60 = scmp.eq.s32.totalorder %s26, 0
      %p61 = por %p59, %p60
      %p62 = scmp.ne.s32.totalorder %s48, %s49
      %p63 = scmp.eq.s32.totalorder %s27, 3
      %p64 = por %p62, %p63
      %p66 = scmp.ne.s32.totalorder %s49, %s65
      %p67 = scmp.eq.s32.totalorder %s27, 0
      %p68 = por %p66, %p67
      %s69 = ssub.s32 %s29, %s36
      %s70 = ssub.s32 %s28, %s40
      %s71 = sor.u32 %s69, %s70
      %p72 = scmp.eq.s32.totalorder %s71, 0
      %s74 = sadd.s32 %s73, 1
      %s75 = scalar_select %p72, %s73, %s74
      %p78 = pneg %p72
      %p79 = scmp.eq.s32.totalorder %s21, 3
      %p80 = por %p78, %p79
      %p81 = scmp.ne.s32.totalorder %s73, %s76
      %p82 = scmp.eq.s32.totalorder %s21, 0
      %p83 = por %p81, %p82
      %p84 = scmp.ne.s32.totalorder %s73, %s76
      %p85 = scmp.eq.s32.totalorder %s26, 3
      %p86 = por %p84, %p85
      %p87 = scmp.ne.s32.totalorder %s76, %s77
      %p88 = scmp.eq.s32.totalorder %s26, 0
      %p89 = por %p87, %p88
      %p90 = scmp.ne.s32.totalorder %s76, %s77
      %p91 = scmp.eq.s32.totalorder %s27, 3
      %p92 = por %p90, %p91
      %p94 = scmp.ne.s32.totalorder %s77, %s93
      %p95 = scmp.eq.s32.totalorder %s27, 0
      %p96 = por %p94, %p95
      %s97 = ssub.s32 %s29, %s36
      %s98 = ssub.s32 %s28, %s40
      %s99 = sor.u32 %s97, %s98
      %p100 = scmp.eq.s32.totalorder %s99, 0
      %s102 = sadd.s32 %s101, 1
      %s103 = scalar_select %p100, %s101, %s102
      %p106 = pneg %p100
      %p107 = scmp.eq.s32.totalorder %s21, 3
      %p108 = por %p106, %p107
      %p109 = scmp.ne.s32.totalorder %s101, %s104
      %p110 = scmp.eq.s32.totalorder %s21, 0
      %p111 = por %p109, %p110
      %p112 = scmp.ne.s32.totalorder %s101, %s104
      %p113 = scmp.eq.s32.totalorder %s26, 3
      %p114 = por %p112, %p113
      %p115 = scmp.ne.s32.totalorder %s104, %s105
      %p116 = scmp.eq.s32.totalorder %s26, 0
      %p117 = por %p115, %p116
      %p118 = scmp.ne.s32.totalorder %s104, %s105
      %p119 = scmp.eq.s32.totalorder %s27, 3
      %p120 = por %p118, %p119
      %p122 = scmp.ne.s32.totalorder %s105, %s121
      %p123 = scmp.eq.s32.totalorder %s27, 0
      %p124 = por %p122, %p123
      %s126 = sadd.s32 %s125, 1
      %p129 = scmp.eq.s32.totalorder %s21, 3
      %p130 = scmp.ne.s32.totalorder %s125, %s127
      %p131 = scmp.eq.s32.totalorder %s21, 0
      %p132 = por %p130, %p131
      %p133 = scmp.ne.s32.totalorder %s125, %s127
      %p134 = scmp.eq.s32.totalorder %s26, 3
      %p135 = por %p133, %p134
      %p136 = scmp.ne.s32.totalorder %s127, %s128
      %p137 = scmp.eq.s32.totalorder %s26, 0
      %p138 = por %p136, %p137
      %p139 = scmp.ne.s32.totalorder %s127, %s128
      %p140 = scmp.eq.s32.totalorder %s27, 3
      %p141 = por %p139, %p140
      %p143 = scmp.ne.s32.totalorder %s128, %s142
      %p144 = scmp.eq.s32.totalorder %s27, 0
      %p145 = por %p143, %p144
      %s147 = sadd.s32 %s146, 1
      %p150 = scmp.eq.s32.totalorder %s21, 3
      %p151 = scmp.ne.s32.totalorder %s146, %s148
      %p152 = scmp.eq.s32.totalorder %s21, 0
      %p153 = por %p151, %p152
      %p154 = scmp.ne.s32.totalorder %s146, %s148
      %p155 = scmp.eq.s32.totalorder %s26, 3
      %p156 = por %p154, %p155
      %p157 = scmp.ne.s32.totalorder %s148, %s149
      %p158 = scmp.eq.s32.totalorder %s26, 0
      %p159 = por %p157, %p158
      %p160 = scmp.ne.s32.totalorder %s148, %s149
      %p161 = scmp.eq.s32.totalorder %s27, 3
      %p162 = por %p160, %p161
      %p164 = scmp.ne.s32.totalorder %s149, %s163
      %p165 = scmp.eq.s32.totalorder %s27, 0
      %p166 = por %p164, %p165
      %s168 = sadd.s32 %s167, 1
      %p171 = scmp.eq.s32.totalorder %s21, 3
      %p172 = scmp.ne.s32.totalorder %s167, %s169
      %p173 = scmp.eq.s32.totalorder %s21, 0
      %p174 = por %p172, %p173
      %p175 = scmp.ne.s32.totalorder %s167, %s169
      %p176 = scmp.eq.s32.totalorder %s26, 3
      %p177 = por %p175, %p176
      %p178 = scmp.ne.s32.totalorder %s169, %s170
      %p179 = scmp.eq.s32.totalorder %s26, 0
      %p180 = por %p178, %p179
      %p181 = scmp.ne.s32.totalorder %s169, %s170
      %p182 = scmp.eq.s32.totalorder %s27, 3
      %p183 = por %p181, %p182
      %p185 = scmp.ne.s32.totalorder %s170, %s184
      %p186 = scmp.eq.s32.totalorder %s27, 0
      %p187 = por %p185, %p186
      %s188 = ssub.s32 %s29, %s36
      %s189 = ssub.s32 %s28, %s40
      %s190 = sor.u32 %s188, %s189
      %p191 = scmp.eq.s32.totalorder %s190, 0
      %s193 = sadd.s32 %s192, 1
      %s194 = scalar_select %p191, %s192, %s193
      %p197 = pneg %p191
      %p198 = scmp.eq.s32.totalorder %s21, 3
      %p199 = por %p197, %p198
      %p200 = scmp.ne.s32.totalorder %s192, %s195
      %p201 = scmp.eq.s32.totalorder %s21, 0
      %p202 = por %p200, %p201
      %p203 = scmp.ne.s32.totalorder %s192, %s195
      %p204 = scmp.eq.s32.totalorder %s26, 3
      %p205 = por %p203, %p204
      %p206 = scmp.ne.s32.totalorder %s195, %s196
      %p207 = scmp.eq.s32.totalorder %s26, 0
      %p208 = por %p206, %p207
      %p209 = scmp.ne.s32.totalorder %s195, %s196
      %p210 = scmp.eq.s32.totalorder %s27, 3
      %p211 = por %p209, %p210
      %p213 = scmp.ne.s32.totalorder %s196, %s212
      %p214 = scmp.eq.s32.totalorder %s27, 0
      %p215 = por %p213, %p214
      %p216 = scmp.le.s32.totalorder 1, %s21
      %p217 = scmp.lt.s32.totalorder %s21, 5
      %p218 = pnand %p216, %p217
      %p219 = pneg %p218
      // Predicated region
      $region9: #{tpu_custom_call.1} parent=5 // pred_check
        _
      $region10: #{tpu_custom_call.1} parent=5 // pred_check_branch
        %221 = sbr.rel (%p218) target = $region12
      $region11: #{tpu_custom_call.1} parent=5 // pred_region
        %s222 = ssub.s32 %s21, 1
        // Predicated region
        $region13: #{tpu_custom_call.1} parent=11 // pred_check
          %p223 = pneg %p138
        $region14: #{tpu_custom_call.1} parent=11 // pred_check_branch
          %225 = sbr.rel (%p223) target = $region16
        $region15: #{tpu_custom_call.1} parent=11 // pred_region
          _
        $region16: #{tpu_custom_call.1} parent=11 // pred_fallthru
          _
        // Predicated region
        $region17: #{tpu_custom_call.1} parent=11 // pred_check
          %p226 = pneg %p159
        $region18: #{tpu_custom_call.1} parent=11 // pred_check_branch
          %228 = sbr.rel (%p226) target = $region20
        $region19: #{tpu_custom_call.1} parent=11 // pred_region
          _
        $region20: #{tpu_custom_call.1} parent=11 // pred_fallthru
          _
        // Predicated region
        $region21: #{tpu_custom_call.1} parent=11 // pred_check
          %p229 = pneg %p180
        $region22: #{tpu_custom_call.1} parent=11 // pred_check_branch
          %231 = sbr.rel (%p229) target = $region24
        $region23: #{tpu_custom_call.1} parent=11 // pred_region
          _
        $region24: #{tpu_custom_call.1} parent=11 // pred_fallthru
          _
      $region12: #{tpu_custom_call.1} parent=5 // pred_fallthru
        _
      %p232 = scmp.lt.s32.totalorder %s21, 4
      // Predicated region
      $region25: #{tpu_custom_call.1} parent=5 // pred_check
        %p233 = pneg %p232
      $region26: #{tpu_custom_call.1} parent=5 // pred_check_branch
        %235 = sbr.rel (%p233) target = $region28
      $region27: #{tpu_custom_call.1} parent=5 // pred_region
        // Predicated region
        $region29: #{tpu_custom_call.1} parent=27 // pred_check
          %p236 = pneg %p55
        $region30: #{tpu_custom_call.1} parent=27 // pred_check_branch
          %238 = sbr.rel (%p236) target = $region32
        $region31: #{tpu_custom_call.1} parent=27 // pred_region
          %p239 = scmp.lt.s32.totalorder %s29, 1
          %s240 = scalar_select %p239, %s29, 1
          %p241 = scmp.lt.s32.totalorder %s28, 1
          %s242 = scalar_select %p241, %s28, 1
          %s243 = smul.addr %s240, 2
          %s244 = sadd.s32 %s242, %s243
          %s245 = smul.addr %s244, 8
          %s246 = scalar_lea.vmem %s0, %s245
        $region32: #{tpu_custom_call.1} parent=27 // pred_fallthru
          _
        // Predicated region
        $region33: #{tpu_custom_call.1} parent=27 // pred_check
          %p247 = pneg %p83
        $region34: #{tpu_custom_call.1} parent=27 // pred_check_branch
          %249 = sbr.rel (%p247) target = $region36
        $region35: #{tpu_custom_call.1} parent=27 // pred_region
          %s250 = sand.u32 %s73, 1
          %s251 = scalar_lea.sflag [#allocation3], %s250
          %s252 = sand.u32 %s73, 1
          %s253 = smul.addr %s252, 8
          %s254 = scalar_lea.vmem [#allocation2], %s253
          %256 = vsyncadd %s251, 0
          %s257 = smul.addr %s29, 2
          %s258 = sadd.s32 %s28, %s257
          %s259 = smul.addr %s258, 8
          %s260 = scalar_lea.hbm %s1, %s259
          %s262 = sshll.u32 %s260, 4
          %s263 = int_to_ptr.hbm [resolvable:$true] %s262
          %s264 = sshll.u32 %s254, 4
          %s265 = int_to_ptr.vmem [resolvable:$true] %s264
          %267 = dma.hbm_to_vmem [thread:$0]  %s263, 128, %s265, %s251
        $region36: #{tpu_custom_call.1} parent=27 // pred_fallthru
          _
        // Predicated region
        $region37: #{tpu_custom_call.1} parent=27 // pred_check
          %p268 = pneg %p111
        $region38: #{tpu_custom_call.1} parent=27 // pred_check_branch
          %270 = sbr.rel (%p268) target = $region40
        $region39: #{tpu_custom_call.1} parent=27 // pred_region
          %s271 = sand.u32 %s101, 1
          %s272 = scalar_lea.sflag [#allocation6], %s271
          %s273 = sand.u32 %s101, 1
          %s274 = smul.addr %s273, 8
          %s275 = scalar_lea.vmem [#allocation5], %s274
          %277 = vsyncadd %s272, 0
          %s278 = smul.addr %s29, 2
          %s279 = sadd.s32 %s28, %s278
          %s280 = smul.addr %s279, 8
          %s281 = scalar_lea.hbm %s2, %s280
          %s283 = sshll.u32 %s281, 4
          %s284 = int_to_ptr.hbm [resolvable:$true] %s283
          %s285 = sshll.u32 %s275, 4
          %s286 = int_to_ptr.vmem [resolvable:$true] %s285
          %288 = dma.hbm_to_vmem [thread:$0]  %s284, 128, %s286, %s272
        $region40: #{tpu_custom_call.1} parent=27 // pred_fallthru
          _
      $region28: #{tpu_custom_call.1} parent=5 // pred_fallthru
        _
      %p289 = scmp.le.s32.totalorder 1, %s21
      %p290 = scmp.lt.s32.totalorder %s21, 5
      %p291 = pnand %p289, %p290
      %p292 = pneg %p291
      // Predicated region
      $region41: #{tpu_custom_call.1} parent=5 // pred_check
        _
      $region42: #{tpu_custom_call.1} parent=5 // pred_check_branch
        %294 = sbr.rel (%p291) target = $region44
      $region43: #{tpu_custom_call.1} parent=5 // pred_region
        %s295 = ssub.s32 %s21, 1
        %s296 = sand.u32 %s76, 1
        %s297 = scalar_lea.sflag [#allocation3], %s296
        %s298 = sand.u32 %s76, 1
        %s299 = smul.addr %s298, 8
        %s300 = scalar_lea.vmem [#allocation2], %s299
        // Predicated region
        $region45: #{tpu_custom_call.1} parent=43 // pred_check
          %p301 = pneg %p89
        $region46: #{tpu_custom_call.1} parent=43 // pred_check_branch
          %303 = sbr.rel (%p301) target = $region48
        $region47: #{tpu_custom_call.1} parent=43 // pred_region
          %305 = dma.done %s297, 128
        $region48: #{tpu_custom_call.1} parent=43 // pred_fallthru
          _
        %s306 = sand.u32 %s104, 1
        %s307 = scalar_lea.sflag [#allocation6], %s306
        %s308 = sand.u32 %s104, 1
        %s309 = smul.addr %s308, 8
        %s310 = scalar_lea.vmem [#allocation5], %s309
        // Predicated region
        $region49: #{tpu_custom_call.1} parent=43 // pred_check
          %p311 = pneg %p117
        $region50: #{tpu_custom_call.1} parent=43 // pred_check_branch
          %313 = sbr.rel (%p311) target = $region52
        $region51: #{tpu_custom_call.1} parent=43 // pred_region
          %315 = dma.done %s307, 128
        $region52: #{tpu_custom_call.1} parent=43 // pred_fallthru
          _
        %p316 = scmp.lt.s32.totalorder %s31, 1
        %s317 = scalar_select %p316, %s31, 1
        %p318 = scmp.lt.s32.totalorder %s30, 1
        %s319 = scalar_select %p318, %s30, 1
        %s320 = smul.addr %s317, 2
        %s321 = sadd.s32 %s319, %s320
        %s322 = smul.addr %s321, 8
        %s323 = scalar_lea.vmem %s0, %s322
        %p324 = pneg %p61
        %p325 = pneg %p58
        %s326 = sand.u32 %s76, 1
        %s327 = scalar_lea.sflag [#allocation3], %s326
        %s328 = sand.u32 %s76, 1
        %s329 = smul.addr %s328, 8
        %s330 = scalar_lea.vmem [#allocation2], %s329
        %p331 = pneg %p89
        %p332 = pneg %p86
        %s333 = sand.u32 %s104, 1
        %s334 = scalar_lea.sflag [#allocation6], %s333
        %s335 = sand.u32 %s104, 1
        %s336 = smul.addr %s335, 8
        %s337 = scalar_lea.vmem [#allocation5], %s336
        %p338 = pneg %p117
        %p339 = pneg %p114
        %p340 = pneg %p138
        %p341 = pneg %p135
        %p342 = pneg %p159
        %p343 = pneg %p156
        %p344 = pneg %p180
        %p345 = pneg %p177
        %p346 = pneg %p208
        %p347 = pneg %p205
        %s348 = sand.u32 %s195, 1
        %s349 = scalar_lea.sflag [#allocation4], %s348
        %s350 = sand.u32 %s195, 1
        %s351 = smul.addr %s350, 8
        %s352 = scalar_lea.vmem [#allocation7], %s351
        %p353 = scmp.lt.s32.totalorder %s31, 1
        %s354 = scalar_select %p353, %s31, 1
        %p355 = scmp.lt.s32.totalorder %s30, 1
        %s356 = scalar_select %p355, %s30, 1
        %s357 = smul.addr %s354, 2
        %s358 = sadd.s32 %s356, %s357
        %s359 = smul.addr %s358, 8
        %s360 = scalar_lea.vmem %s0, %s359
        %v362 = vld [vmem:[%s3] sm:$0xff]
        %v363 = vld [vmem:[%s3 + $0x8] sm:$0xff]
        %v364 = vld [vmem:[%s3 + $0x10] sm:$0xff]
        %v365 = vld [vmem:[%s3 + $0x18] sm:$0xff]
        %v366 = vld [vmem:[%s360] sm:$0xff]
        %v367 = vld [vmem:[%s300] sm:$0xff]
        %v368 = vld [vmem:[%s310] sm:$0xff]
        %370 = vrot.lane.b32.xlu0 %v366, 16
        %v371 = vpop.permute.xlu0 %370
        %374 = vrot.lane.b32.xlu0 %v368, 16
        %v375 = vpop.permute.xlu0 %374
        %vm377 = vcmask 130048
        %v378 = vsel %vm377, %v367, %v371
        %v379 = vsel %vm377, %v371, %v375
        %vm380 = vcmask 261120
        %v381 = vsel %vm380, %v379, 0.0
        %v382 = vlaneseq
        %v383 = vand.u32 %v382, 127
        %v384 = vadd.s32 %v383, 128
        %vm385 = vcmp.lt.s32.totalorder %v383, 0
        %v386 = vsub.s32 0, %v383
        %v387 = vsel %vm385, %v386, %v383
        %v388 = vshrl.u32 %v387, 4
        %v389 = vand.u32 %v387, 15
        %v390 = vsub.s32 0, %v389
        %v391 = vsel %vm385, %v390, %v389
        %vm392 = vcmp.lt.s32.totalorder %v384, 0
        %v393 = vsub.s32 0, %v384
        %v394 = vsel %vm392, %v393, %v384
        %v395 = vshrl.u32 %v394, 4
        %v396 = vand.u32 %v394, 15
        %v397 = vsub.s32 0, %v396
        %v398 = vsel %vm392, %v397, %v396
        %vm399 = vcmp.ne.s32.totalorder %v391, 0
        %vm400 = vcmp.ne.s32.totalorder %v398, 0
        %vm401 = vcmp.lt.s32.totalorder %v391, 0
        %vm402 = vcmp.lt.s32.totalorder %v398, 0
        %vm403 = vmand %vm401, %vm399
        %vm404 = vmand %vm402, %vm400
        %v405 = vadd.s32 %v391, 16
        %v406 = vadd.s32 %v398, 16
        %v407 = vsel %vm403, %v405, %v391
        %v408 = vsel %vm404, %v406, %v398
        %v409 = vld [vmem:[%s4] sm:$0xf]
        %v410 = vld [vmem:[%s4 + $0x4] sm:$0xf]
        %v411 = vld [vmem:[%s4 + $0x8] sm:$0xf]
        %v412 = vld [vmem:[%s4 + $0xc] sm:$0xf]
        %v413 = vpack.c.bf16 %v378, %v378
        %v414 = vpack.c.bf16 %v381, %v381
        %416 = vset.pattern.permute.xlu0 9
        %417 = vperm.xlu0 %416, %v362
        %v418 = vpop.permute.xlu0 %417
        %421 = vset.pattern.permute.xlu0 9
        %422 = vperm.xlu0 %421, %v363
        %v423 = vpop.permute.xlu0 %422
        %426 = vset.pattern.permute.xlu0 9
        %427 = vperm.xlu0 %426, %v364
        %v428 = vpop.permute.xlu0 %427
        %431 = vset.pattern.permute.xlu0 9
        %432 = vperm.xlu0 %431, %v365
        %v433 = vpop.permute.xlu0 %432
        %v439 = vunpack.c.l.b16 %v409
        %v440 = vunpack.c.l.b16 %v410
        %v441 = vunpack.c.l.b16 %v411
        %v442 = vunpack.c.l.b16 %v412
        %v443 = vpack.c.b16 %v440, %v439
        %v444 = vpack.c.b16 %v442, %v441
        %vm445 = vcmask 64512
        %v447 = vsel %vm445, %v443, 0
        %v450 = vsel %vm445, %v444, 0
        %vm452 = vcmask 1043456
        %v454 = vsel %vm452, %v413, 0
        %v457 = vsel %vm452, %v414, 0
        %459 = vmatpush.bf16.msra.mxu0 0
        %460 = vmatpush.bf16.msra.mxu0 0
        %461 = vmatpush.bf16.msra.mxu0 0
        %462 = vmatpush.bf16.msra.mxu0 0
        %463 = vmatpush.bf16.msra.mxu0 0
        %464 = vmatpush.bf16.msra.mxu0 0
        %465 = vmatpush.bf16.msra.mxu0 0
        %466 = vmatpush.bf16.msra.mxu0 %v454
        %467 = vmatmul.bf16.gmra.mxu0 %v447
        %v468 = vpop.f32.mrf.mxu0
        %v469 = vadd.f32 %v418, %v468
        %v470 = vpop.f32.mrf.mxu0
        %v471 = vadd.f32 %v423, %v470
        %472 = vmatmul.bf16.gmra.mxu0 %v450
        %v473 = vpop.f32.mrf.mxu0
        %v474 = vadd.f32 %v428, %v473
        %v475 = vpop.f32.mrf.mxu0
        %v476 = vadd.f32 %v433, %v475
        %477 = vdwg.mxu0
        %478 = vmatpush.bf16.msra.mxu0 0
        %479 = vmatpush.bf16.msra.mxu0 0
        %480 = vmatpush.bf16.msra.mxu0 0
        %481 = vmatpush.bf16.msra.mxu0 0
        %482 = vmatpush.bf16.msra.mxu0 0
        %483 = vmatpush.bf16.msra.mxu0 0
        %484 = vmatpush.bf16.msra.mxu0 0
        %485 = vmatpush.bf16.msra.mxu0 %v457
        %486 = vmatmul.bf16.gmra.mxu0 %v447
        %v487 = vpop.f32.mrf.mxu0
        %v488 = vadd.f32 %v418, %v487
        %v489 = vpop.f32.mrf.mxu0
        %v490 = vadd.f32 %v423, %v489
        %491 = vmatmul.bf16.gmra.mxu0 %v450
        %v492 = vpop.f32.mrf.mxu0
        %v493 = vadd.f32 %v428, %v492
        %v494 = vpop.f32.mrf.mxu0
        %v495 = vadd.f32 %v433, %v494
        %496 = vdwg.mxu0
        %v497 = vmax.f32 %v469, 0.0
        %v498 = vmax.f32 %v488, 0.0
        %v499 = vmax.f32 %v471, 0.0
        %v500 = vmax.f32 %v490, 0.0
        %v501 = vmax.f32 %v474, 0.0
        %v502 = vmax.f32 %v493, 0.0
        %v503 = vmax.f32 %v476, 0.0
        %v504 = vmax.f32 %v495, 0.0
        %v505 = vmin.f32 %v497, 6.0
        %v506 = vmin.f32 %v498, 6.0
        %v507 = vmin.f32 %v499, 6.0
        %v508 = vmin.f32 %v500, 6.0
        %v509 = vmin.f32 %v501, 6.0
        %v510 = vmin.f32 %v502, 6.0
        %v511 = vmin.f32 %v503, 6.0
        %v512 = vmin.f32 %v504, 6.0
        %p513 = scmp.gt.s32.totalorder %s30, 0
        %s514 = scalar_select %p513, 1, 0
        %s515 = scvt.s32.f32 %s514
        %p516 = scmp.lt.s32.totalorder %s30, 1
        %s517 = scalar_select %p516, 1, 0
        %s518 = scvt.s32.f32 %s517
        %vm519 = vcmp.lt.s32.totalorder %v383, 16
        %vm520 = vcmp.lt.s32.totalorder %v384, 16
        %vm521 = vcmp.ge.s32.totalorder %v383, 144
        %vm522 = vcmp.ge.s32.totalorder %v384, 144
        %v523 = vstv %s518
        %v524 = vsel %vm521, %v523, 1.0
        %v525 = vsel %vm522, %v523, 1.0
        %v526 = vstv %s515
        %v527 = vsel %vm519, %v526, %v524
        %v528 = vsel %vm520, %v526, %v525
        %v529 = vmul.f32 %v505, %v527
        %v530 = vmul.f32 %v506, %v528
        %v531 = vmul.f32 %v507, %v527
        %v532 = vmul.f32 %v508, %v528
        %v533 = vmul.f32 %v509, %v527
        %v534 = vmul.f32 %v510, %v528
        %v535 = vmul.f32 %v511, %v527
        %v536 = vmul.f32 %v512, %v528
        %vm537 = vcmp.ne.s32.totalorder %v407, 0
        %vm538 = vcmp.ne.s32.totalorder %v408, 0
        %v539 = vsel %vm537, 1, 0
        %v540 = vsel %vm538, 1, 0
        %v541 = vcvt.s32.f32 %v539
        %v542 = vcvt.s32.f32 %v540
        %vm543 = vcmp.ne.s32.totalorder %v407, 15
        %vm544 = vcmp.ne.s32.totalorder %v408, 15
        %v545 = vsel %vm543, 1, 0
        %v546 = vsel %vm544, 1, 0
        %v547 = vcvt.s32.f32 %v545
        %v548 = vcvt.s32.f32 %v546
        %549 = vrot.lane.b32.xlu0 %v529, 17
        %v550 = vpop.permute.xlu0 %549
        %551 = vrot.lane.b32.xlu0 %v531, 17
        %v552 = vpop.permute.xlu0 %551
        %553 = vrot.lane.b32.xlu0 %v533, 17
        %v554 = vpop.permute.xlu0 %553
        %555 = vrot.lane.b32.xlu0 %v535, 17
        %v556 = vpop.permute.xlu0 %555
        %557 = vrot.lane.b32.xlu0 %v530, 17
        %v558 = vpop.permute.xlu0 %557
        %559 = vrot.lane.b32.xlu0 %v532, 17
        %v560 = vpop.permute.xlu0 %559
        %561 = vrot.lane.b32.xlu0 %v534, 17
        %v562 = vpop.permute.xlu0 %561
        %563 = vrot.lane.b32.xlu0 %v536, 17
        %v564 = vpop.permute.xlu0 %563
        %vm565 = vcmp.lt.s32.totalorder %v383, 17
        %v566 = vsel %vm565, %v550, %v558
        %v567 = vsel %vm565, %v552, %v560
        %v568 = vsel %vm565, %v554, %v562
        %v569 = vsel %vm565, %v556, %v564
        %v570 = vsel %vm565, %v558, %v550
        %v571 = vsel %vm565, %v560, %v552
        %v572 = vsel %vm565, %v562, %v554
        %v573 = vsel %vm565, %v564, %v556
        %574 = vset.pattern.permute.xlu0 0
        %575 = vperm.xlu0 %574, %v362
        %v576 = vpop.permute.xlu0 %575
        %578 = vset.pattern.permute.xlu0 0
        %579 = vperm.xlu0 %578, %v363
        %v580 = vpop.permute.xlu0 %579
        %582 = vset.pattern.permute.xlu0 0
        %583 = vperm.xlu0 %582, %v364
        %v584 = vpop.permute.xlu0 %583
        %586 = vset.pattern.permute.xlu0 0
        %587 = vperm.xlu0 %586, %v365
        %v588 = vpop.permute.xlu0 %587
        %v590 = vmul.f32 %v570, %v576
        %v591 = vmul.f32 %v566, %v576
        %v592 = vmul.f32 %v571, %v580
        %v593 = vmul.f32 %v567, %v580
        %v594 = vmul.f32 %v572, %v584
        %v595 = vmul.f32 %v568, %v584
        %v596 = vmul.f32 %v573, %v588
        %v597 = vmul.f32 %v569, %v588
        %v598 = vmul.f32 %v590, %v541
        %v599 = vmul.f32 %v591, %v542
        %v600 = vmul.f32 %v592, %v541
        %v601 = vmul.f32 %v593, %v542
        %v602 = vmul.f32 %v594, %v541
        %v603 = vmul.f32 %v595, %v542
        %v604 = vmul.f32 %v596, %v541
        %v605 = vmul.f32 %v597, %v542
        %606 = vrot.lane.b32.xlu0 %v529, 16
        %v607 = vpop.permute.xlu0 %606
        %608 = vrot.lane.b32.xlu0 %v531, 16
        %v609 = vpop.permute.xlu0 %608
        %610 = vrot.lane.b32.xlu0 %v533, 16
        %v611 = vpop.permute.xlu0 %610
        %612 = vrot.lane.b32.xlu0 %v535, 16
        %v613 = vpop.permute.xlu0 %612
        %614 = vrot.lane.b32.xlu0 %v530, 16
        %v615 = vpop.permute.xlu0 %614
        %616 = vrot.lane.b32.xlu0 %v532, 16
        %v617 = vpop.permute.xlu0 %616
        %618 = vrot.lane.b32.xlu0 %v534, 16
        %v619 = vpop.permute.xlu0 %618
        %620 = vrot.lane.b32.xlu0 %v536, 16
        %v621 = vpop.permute.xlu0 %620
        %v622 = vsel %vm519, %v607, %v615
        %v623 = vsel %vm519, %v609, %v617
        %v624 = vsel %vm519, %v611, %v619
        %v625 = vsel %vm519, %v613, %v621
        %v626 = vsel %vm519, %v615, %v607
        %v627 = vsel %vm519, %v617, %v609
        %v628 = vsel %vm519, %v619, %v611
        %v629 = vsel %vm519, %v621, %v613
        %630 = vset.pattern.permute.xlu0 1
        %631 = vperm.xlu0 %630, %v362
        %v632 = vpop.permute.xlu0 %631
        %634 = vset.pattern.permute.xlu0 1
        %635 = vperm.xlu0 %634, %v363
        %v636 = vpop.permute.xlu0 %635
        %638 = vset.pattern.permute.xlu0 1
        %639 = vperm.xlu0 %638, %v364
        %v640 = vpop.permute.xlu0 %639
        %642 = vset.pattern.permute.xlu0 1
        %643 = vperm.xlu0 %642, %v365
        %v644 = vpop.permute.xlu0 %643
        %v646 = vmul.f32 %v626, %v632
        %v647 = vmul.f32 %v622, %v632
        %v648 = vmul.f32 %v627, %v636
        %v649 = vmul.f32 %v623, %v636
        %v650 = vmul.f32 %v628, %v640
        %v651 = vmul.f32 %v624, %v640
        %v652 = vmul.f32 %v629, %v644
        %v653 = vmul.f32 %v625, %v644
        %v654 = vadd.f32 %v598, %v646
        %v655 = vadd.f32 %v599, %v647
        %v656 = vadd.f32 %v600, %v648
        %v657 = vadd.f32 %v601, %v649
        %v658 = vadd.f32 %v602, %v650
        %v659 = vadd.f32 %v603, %v651
        %v660 = vadd.f32 %v604, %v652
        %v661 = vadd.f32 %v605, %v653
        %662 = vrot.lane.b32.xlu0 %v529, 15
        %v663 = vpop.permute.xlu0 %662
        %664 = vrot.lane.b32.xlu0 %v531, 15
        %v665 = vpop.permute.xlu0 %664
        %666 = vrot.lane.b32.xlu0 %v533, 15
        %v667 = vpop.permute.xlu0 %666
        %668 = vrot.lane.b32.xlu0 %v535, 15
        %v669 = vpop.permute.xlu0 %668
        %670 = vrot.lane.b32.xlu0 %v530, 15
        %v671 = vpop.permute.xlu0 %670
        %672 = vrot.lane.b32.xlu0 %v532, 15
        %v673 = vpop.permute.xlu0 %672
        %674 = vrot.lane.b32.xlu0 %v534, 15
        %v675 = vpop.permute.xlu0 %674
        %676 = vrot.lane.b32.xlu0 %v536, 15
        %v677 = vpop.permute.xlu0 %676
        %vm678 = vcmp.lt.s32.totalorder %v383, 15
        %v679 = vsel %vm678, %v663, %v671
        %v680 = vsel %vm678, %v665, %v673
        %v681 = vsel %vm678, %v667, %v675
        %v682 = vsel %vm678, %v669, %v677
        %v683 = vsel %vm678, %v671, %v663
        %v684 = vsel %vm678, %v673, %v665
        %v685 = vsel %vm678, %v675, %v667
        %v686 = vsel %vm678, %v677, %v669
        %687 = vset.pattern.permute.xlu0 2
        %688 = vperm.xlu0 %687, %v362
        %v689 = vpop.permute.xlu0 %688
        %691 = vset.pattern.permute.xlu0 2
        %692 = vperm.xlu0 %691, %v363
        %v693 = vpop.permute.xlu0 %692
        %695 = vset.pattern.permute.xlu0 2
        %696 = vperm.xlu0 %695, %v364
        %v697 = vpop.permute.xlu0 %696
        %699 = vset.pattern.permute.xlu0 2
        %700 = vperm.xlu0 %699, %v365
        %v701 = vpop.permute.xlu0 %700
        %v703 = vmul.f32 %v683, %v689
        %v704 = vmul.f32 %v679, %v689
        %v705 = vmul.f32 %v684, %v693
        %v706 = vmul.f32 %v680, %v693
        %v707 = vmul.f32 %v685, %v697
        %v708 = vmul.f32 %v681, %v697
        %v709 = vmul.f32 %v686, %v701
        %v710 = vmul.f32 %v682, %v701
        %v711 = vmul.f32 %v703, %v547
        %v712 = vmul.f32 %v704, %v548
        %v713 = vmul.f32 %v705, %v547
        %v714 = vmul.f32 %v706, %v548
        %v715 = vmul.f32 %v707, %v547
        %v716 = vmul.f32 %v708, %v548
        %v717 = vmul.f32 %v709, %v547
        %v718 = vmul.f32 %v710, %v548
        %v719 = vadd.f32 %v654, %v711
        %v720 = vadd.f32 %v655, %v712
        %v721 = vadd.f32 %v656, %v713
        %v722 = vadd.f32 %v657, %v714
        %v723 = vadd.f32 %v658, %v715
        %v724 = vadd.f32 %v659, %v716
        %v725 = vadd.f32 %v660, %v717
        %v726 = vadd.f32 %v661, %v718
        %727 = vrot.lane.b32.xlu0 %v529, 1
        %v728 = vpop.permute.xlu0 %727
        %729 = vrot.lane.b32.xlu0 %v531, 1
        %v730 = vpop.permute.xlu0 %729
        %731 = vrot.lane.b32.xlu0 %v533, 1
        %v732 = vpop.permute.xlu0 %731
        %733 = vrot.lane.b32.xlu0 %v535, 1
        %v734 = vpop.permute.xlu0 %733
        %735 = vrot.lane.b32.xlu0 %v530, 1
        %v736 = vpop.permute.xlu0 %735
        %737 = vrot.lane.b32.xlu0 %v532, 1
        %v738 = vpop.permute.xlu0 %737
        %739 = vrot.lane.b32.xlu0 %v534, 1
        %v740 = vpop.permute.xlu0 %739
        %741 = vrot.lane.b32.xlu0 %v536, 1
        %v742 = vpop.permute.xlu0 %741
        %vm743 = vcmp.lt.s32.totalorder %v383, 1
        %v744 = vsel %vm743, %v728, %v736
        %v745 = vsel %vm743, %v730, %v738
        %v746 = vsel %vm743, %v732, %v740
        %v747 = vsel %vm743, %v734, %v742
        %v748 = vsel %vm743, %v736, %v728
        %v749 = vsel %vm743, %v738, %v730
        %v750 = vsel %vm743, %v740, %v732
        %v751 = vsel %vm743, %v742, %v734
        %752 = vset.pattern.permute.xlu0 3
        %753 = vperm.xlu0 %752, %v362
        %v754 = vpop.permute.xlu0 %753
        %756 = vset.pattern.permute.xlu0 3
        %757 = vperm.xlu0 %756, %v363
        %v758 = vpop.permute.xlu0 %757
        %760 = vset.pattern.permute.xlu0 3
        %761 = vperm.xlu0 %760, %v364
        %v762 = vpop.permute.xlu0 %761
        %764 = vset.pattern.permute.xlu0 3
        %765 = vperm.xlu0 %764, %v365
        %v766 = vpop.permute.xlu0 %765
        %v768 = vmul.f32 %v748, %v754
        %v769 = vmul.f32 %v744, %v754
        %v770 = vmul.f32 %v749, %v758
        %v771 = vmul.f32 %v745, %v758
        %v772 = vmul.f32 %v750, %v762
        %v773 = vmul.f32 %v746, %v762
        %v774 = vmul.f32 %v751, %v766
        %v775 = vmul.f32 %v747, %v766
        %v776 = vmul.f32 %v768, %v541
        %v777 = vmul.f32 %v769, %v542
        %v778 = vmul.f32 %v770, %v541
        %v779 = vmul.f32 %v771, %v542
        %v780 = vmul.f32 %v772, %v541
        %v781 = vmul.f32 %v773, %v542
        %v782 = vmul.f32 %v774, %v541
        %v783 = vmul.f32 %v775, %v542
        %v784 = vadd.f32 %v719, %v776
        %v785 = vadd.f32 %v720, %v777
        %v786 = vadd.f32 %v721, %v778
        %v787 = vadd.f32 %v722, %v779
        %v788 = vadd.f32 %v723, %v780
        %v789 = vadd.f32 %v724, %v781
        %v790 = vadd.f32 %v725, %v782
        %v791 = vadd.f32 %v726, %v783
        %792 = vset.pattern.permute.xlu0 4
        %793 = vperm.xlu0 %792, %v362
        %v794 = vpop.permute.xlu0 %793
        %796 = vset.pattern.permute.xlu0 4
        %797 = vperm.xlu0 %796, %v363
        %v798 = vpop.permute.xlu0 %797
        %800 = vset.pattern.permute.xlu0 4
        %801 = vperm.xlu0 %800, %v364
        %v802 = vpop.permute.xlu0 %801
        %804 = vset.pattern.permute.xlu0 4
        %805 = vperm.xlu0 %804, %v365
        %v806 = vpop.permute.xlu0 %805
        %v808 = vmul.f32 %v529, %v794
        %v809 = vmul.f32 %v530, %v794
        %v810 = vmul.f32 %v531, %v798
        %v811 = vmul.f32 %v532, %v798
        %v812 = vmul.f32 %v533, %v802
        %v813 = vmul.f32 %v534, %v802
        %v814 = vmul.f32 %v535, %v806
        %v815 = vmul.f32 %v536, %v806
        %v816 = vadd.f32 %v784, %v808
        %v817 = vadd.f32 %v785, %v809
        %v818 = vadd.f32 %v786, %v810
        %v819 = vadd.f32 %v787, %v811
        %v820 = vadd.f32 %v788, %v812
        %v821 = vadd.f32 %v789, %v813
        %v822 = vadd.f32 %v790, %v814
        %v823 = vadd.f32 %v791, %v815
        %824 = vrot.lane.b32.xlu0 %v529, 127
        %v825 = vpop.permute.xlu0 %824
        %826 = vrot.lane.b32.xlu0 %v531, 127
        %v827 = vpop.permute.xlu0 %826
        %828 = vrot.lane.b32.xlu0 %v533, 127
        %v829 = vpop.permute.xlu0 %828
        %830 = vrot.lane.b32.xlu0 %v535, 127
        %v831 = vpop.permute.xlu0 %830
        %832 = vrot.lane.b32.xlu0 %v530, 127
        %v833 = vpop.permute.xlu0 %832
        %834 = vrot.lane.b32.xlu0 %v532, 127
        %v835 = vpop.permute.xlu0 %834
        %836 = vrot.lane.b32.xlu0 %v534, 127
        %v837 = vpop.permute.xlu0 %836
        %838 = vrot.lane.b32.xlu0 %v536, 127
        %v839 = vpop.permute.xlu0 %838
        %vm840 = vcmp.lt.s32.totalorder %v383, 127
        %v841 = vsel %vm840, %v825, %v833
        %v842 = vsel %vm840, %v827, %v835
        %v843 = vsel %vm840, %v829, %v837
        %v844 = vsel %vm840, %v831, %v839
        %v845 = vsel %vm840, %v833, %v825
        %v846 = vsel %vm840, %v835, %v827
        %v847 = vsel %vm840, %v837, %v829
        %v848 = vsel %vm840, %v839, %v831
        %849 = vset.pattern.permute.xlu0 5
        %850 = vperm.xlu0 %849, %v362
        %v851 = vpop.permute.xlu0 %850
        %853 = vset.pattern.permute.xlu0 5
        %854 = vperm.xlu0 %853, %v363
        %v855 = vpop.permute.xlu0 %854
        %857 = vset.pattern.permute.xlu0 5
        %858 = vperm.xlu0 %857, %v364
        %v859 = vpop.permute.xlu0 %858
        %861 = vset.pattern.permute.xlu0 5
        %862 = vperm.xlu0 %861, %v365
        %v863 = vpop.permute.xlu0 %862
        %v865 = vmul.f32 %v841, %v851
        %v866 = vmul.f32 %v845, %v851
        %v867 = vmul.f32 %v842, %v855
        %v868 = vmul.f32 %v846, %v855
        %v869 = vmul.f32 %v843, %v859
        %v870 = vmul.f32 %v847, %v859
        %v871 = vmul.f32 %v844, %v863
        %v872 = vmul.f32 %v848, %v863
        %v873 = vmul.f32 %v865, %v547
        %v874 = vmul.f32 %v866, %v548
        %v875 = vmul.f32 %v867, %v547
        %v876 = vmul.f32 %v868, %v548
        %v877 = vmul.f32 %v869, %v547
        %v878 = vmul.f32 %v870, %v548
        %v879 = vmul.f32 %v871, %v547
        %v880 = vmul.f32 %v872, %v548
        %v881 = vadd.f32 %v816, %v873
        %v882 = vadd.f32 %v817, %v874
        %v883 = vadd.f32 %v818, %v875
        %v884 = vadd.f32 %v819, %v876
        %v885 = vadd.f32 %v820, %v877
        %v886 = vadd.f32 %v821, %v878
        %v887 = vadd.f32 %v822, %v879
        %v888 = vadd.f32 %v823, %v880
        %889 = vrot.lane.b32.xlu0 %v529, 113
        %v890 = vpop.permute.xlu0 %889
        %891 = vrot.lane.b32.xlu0 %v531, 113
        %v892 = vpop.permute.xlu0 %891
        %893 = vrot.lane.b32.xlu0 %v533, 113
        %v894 = vpop.permute.xlu0 %893
        %895 = vrot.lane.b32.xlu0 %v535, 113
        %v896 = vpop.permute.xlu0 %895
        %897 = vrot.lane.b32.xlu0 %v530, 113
        %v898 = vpop.permute.xlu0 %897
        %899 = vrot.lane.b32.xlu0 %v532, 113
        %v900 = vpop.permute.xlu0 %899
        %901 = vrot.lane.b32.xlu0 %v534, 113
        %v902 = vpop.permute.xlu0 %901
        %903 = vrot.lane.b32.xlu0 %v536, 113
        %v904 = vpop.permute.xlu0 %903
        %vm905 = vcmp.lt.s32.totalorder %v383, 113
        %v906 = vsel %vm905, %v890, %v898
        %v907 = vsel %vm905, %v892, %v900
        %v908 = vsel %vm905, %v894, %v902
        %v909 = vsel %vm905, %v896, %v904
        %v910 = vsel %vm905, %v898, %v890
        %v911 = vsel %vm905, %v900, %v892
        %v912 = vsel %vm905, %v902, %v894
        %v913 = vsel %vm905, %v904, %v896
        %914 = vset.pattern.permute.xlu0 6
        %915 = vperm.xlu0 %914, %v362
        %v916 = vpop.permute.xlu0 %915
        %918 = vset.pattern.permute.xlu0 6
        %919 = vperm.xlu0 %918, %v363
        %v920 = vpop.permute.xlu0 %919
        %922 = vset.pattern.permute.xlu0 6
        %923 = vperm.xlu0 %922, %v364
        %v924 = vpop.permute.xlu0 %923
        %926 = vset.pattern.permute.xlu0 6
        %927 = vperm.xlu0 %926, %v365
        %v928 = vpop.permute.xlu0 %927
        %v930 = vmul.f32 %v906, %v916
        %v931 = vmul.f32 %v910, %v916
        %v932 = vmul.f32 %v907, %v920
        %v933 = vmul.f32 %v911, %v920
        %v934 = vmul.f32 %v908, %v924
        %v935 = vmul.f32 %v912, %v924
        %v936 = vmul.f32 %v909, %v928
        %v937 = vmul.f32 %v913, %v928
        %v938 = vmul.f32 %v930, %v541
        %v939 = vmul.f32 %v931, %v542
        %v940 = vmul.f32 %v932, %v541
        %v941 = vmul.f32 %v933, %v542
        %v942 = vmul.f32 %v934, %v541
        %v943 = vmul.f32 %v935, %v542
        %v944 = vmul.f32 %v936, %v541
        %v945 = vmul.f32 %v937, %v542
        %v946 = vadd.f32 %v881, %v938
        %v947 = vadd.f32 %v882, %v939
        %v948 = vadd.f32 %v883, %v940
        %v949 = vadd.f32 %v884, %v941
        %v950 = vadd.f32 %v885, %v942
        %v951 = vadd.f32 %v886, %v943
        %v952 = vadd.f32 %v887, %v944
        %v953 = vadd.f32 %v888, %v945
        %954 = vrot.lane.b32.xlu0 %v529, 112
        %v955 = vpop.permute.xlu0 %954
        %956 = vrot.lane.b32.xlu0 %v531, 112
        %v957 = vpop.permute.xlu0 %956
        %958 = vrot.lane.b32.xlu0 %v533, 112
        %v959 = vpop.permute.xlu0 %958
        %960 = vrot.lane.b32.xlu0 %v535, 112
        %v961 = vpop.permute.xlu0 %960
        %962 = vrot.lane.b32.xlu0 %v530, 112
        %v963 = vpop.permute.xlu0 %962
        %964 = vrot.lane.b32.xlu0 %v532, 112
        %v965 = vpop.permute.xlu0 %964
        %966 = vrot.lane.b32.xlu0 %v534, 112
        %v967 = vpop.permute.xlu0 %966
        %968 = vrot.lane.b32.xlu0 %v536, 112
        %v969 = vpop.permute.xlu0 %968
        %vm970 = vcmp.lt.s32.totalorder %v383, 112
        %v971 = vsel %vm970, %v955, %v963
        %v972 = vsel %vm970, %v957, %v965
        %v973 = vsel %vm970, %v959, %v967
        %v974 = vsel %vm970, %v961, %v969
        %v975 = vsel %vm970, %v963, %v955
        %v976 = vsel %vm970, %v965, %v957
        %v977 = vsel %vm970, %v967, %v959
        %v978 = vsel %vm970, %v969, %v961
        %979 = vset.pattern.permute.xlu0 7
        %980 = vperm.xlu0 %979, %v362
        %v981 = vpop.permute.xlu0 %980
        %983 = vset.pattern.permute.xlu0 7
        %984 = vperm.xlu0 %983, %v363
        %v985 = vpop.permute.xlu0 %984
        %987 = vset.pattern.permute.xlu0 7
        %988 = vperm.xlu0 %987, %v364
        %v989 = vpop.permute.xlu0 %988
        %991 = vset.pattern.permute.xlu0 7
        %992 = vperm.xlu0 %991, %v365
        %v993 = vpop.permute.xlu0 %992
        %v995 = vmul.f32 %v971, %v981
        %v996 = vmul.f32 %v975, %v981
        %v997 = vmul.f32 %v972, %v985
        %v998 = vmul.f32 %v976, %v985
        %v999 = vmul.f32 %v973, %v989
        %v1000 = vmul.f32 %v977, %v989
        %v1001 = vmul.f32 %v974, %v993
        %v1002 = vmul.f32 %v978, %v993
        %v1003 = vadd.f32 %v946, %v995
        %v1004 = vadd.f32 %v947, %v996
        %v1005 = vadd.f32 %v948, %v997
        %v1006 = vadd.f32 %v949, %v998
        %v1007 = vadd.f32 %v950, %v999
        %v1008 = vadd.f32 %v951, %v1000
        %v1009 = vadd.f32 %v952, %v1001
        %v1010 = vadd.f32 %v953, %v1002
        %1011 = vrot.lane.b32.xlu0 %v529, 111
        %v1012 = vpop.permute.xlu0 %1011
        %1013 = vrot.lane.b32.xlu0 %v531, 111
        %v1014 = vpop.permute.xlu0 %1013
        %1015 = vrot.lane.b32.xlu0 %v533, 111
        %v1016 = vpop.permute.xlu0 %1015
        %1017 = vrot.lane.b32.xlu0 %v535, 111
        %v1018 = vpop.permute.xlu0 %1017
        %1019 = vrot.lane.b32.xlu0 %v530, 111
        %v1020 = vpop.permute.xlu0 %1019
        %1021 = vrot.lane.b32.xlu0 %v532, 111
        %v1022 = vpop.permute.xlu0 %1021
        %1023 = vrot.lane.b32.xlu0 %v534, 111
        %v1024 = vpop.permute.xlu0 %1023
        %1025 = vrot.lane.b32.xlu0 %v536, 111
        %v1026 = vpop.permute.xlu0 %1025
        %vm1027 = vcmp.lt.s32.totalorder %v383, 111
        %v1028 = vsel %vm1027, %v1012, %v1020
        %v1029 = vsel %vm1027, %v1014, %v1022
        %v1030 = vsel %vm1027, %v1016, %v1024
        %v1031 = vsel %vm1027, %v1018, %v1026
        %v1032 = vsel %vm1027, %v1020, %v1012
        %v1033 = vsel %vm1027, %v1022, %v1014
        %v1034 = vsel %vm1027, %v1024, %v1016
        %v1035 = vsel %vm1027, %v1026, %v1018
        %1036 = vset.pattern.permute.xlu0 8
        %1037 = vperm.xlu0 %1036, %v362
        %v1038 = vpop.permute.xlu0 %1037
        %1040 = vset.pattern.permute.xlu0 8
        %1041 = vperm.xlu0 %1040, %v363
        %v1042 = vpop.permute.xlu0 %1041
        %1044 = vset.pattern.permute.xlu0 8
        %1045 = vperm.xlu0 %1044, %v364
        %v1046 = vpop.permute.xlu0 %1045
        %1048 = vset.pattern.permute.xlu0 8
        %1049 = vperm.xlu0 %1048, %v365
        %v1050 = vpop.permute.xlu0 %1049
        %v1052 = vmul.f32 %v1028, %v1038
        %v1053 = vmul.f32 %v1032, %v1038
        %v1054 = vmul.f32 %v1029, %v1042
        %v1055 = vmul.f32 %v1033, %v1042
        %v1056 = vmul.f32 %v1030, %v1046
        %v1057 = vmul.f32 %v1034, %v1046
        %v1058 = vmul.f32 %v1031, %v1050
        %v1059 = vmul.f32 %v1035, %v1050
        %v1060 = vmul.f32 %v1052, %v547
        %v1061 = vmul.f32 %v1053, %v548
        %v1062 = vmul.f32 %v1054, %v547
        %v1063 = vmul.f32 %v1055, %v548
        %v1064 = vmul.f32 %v1056, %v547
        %v1065 = vmul.f32 %v1057, %v548
        %v1066 = vmul.f32 %v1058, %v547
        %v1067 = vmul.f32 %v1059, %v548
        %v1068 = vadd.f32 %v1003, %v1060
        %v1069 = vadd.f32 %v1004, %v1061
        %v1070 = vadd.f32 %v1005, %v1062
        %v1071 = vadd.f32 %v1006, %v1063
        %v1072 = vadd.f32 %v1007, %v1064
        %v1073 = vadd.f32 %v1008, %v1065
        %v1074 = vadd.f32 %v1009, %v1066
        %v1075 = vadd.f32 %v1010, %v1067
        %1076 = vset.pattern.permute.xlu0 10
        %1077 = vperm.xlu0 %1076, %v362
        %v1078 = vpop.permute.xlu0 %1077
        %1080 = vset.pattern.permute.xlu0 10
        %1081 = vperm.xlu0 %1080, %v363
        %v1082 = vpop.permute.xlu0 %1081
        %1084 = vset.pattern.permute.xlu0 10
        %1085 = vperm.xlu0 %1084, %v364
        %v1086 = vpop.permute.xlu0 %1085
        %1088 = vset.pattern.permute.xlu0 10
        %1089 = vperm.xlu0 %1088, %v365
        %v1090 = vpop.permute.xlu0 %1089
        %v1092 = vadd.f32 %v1068, %v1078
        %v1093 = vadd.f32 %v1069, %v1078
        %v1094 = vadd.f32 %v1070, %v1082
        %v1095 = vadd.f32 %v1071, %v1082
        %v1096 = vadd.f32 %v1072, %v1086
        %v1097 = vadd.f32 %v1073, %v1086
        %v1098 = vadd.f32 %v1074, %v1090
        %v1099 = vadd.f32 %v1075, %v1090
        %v1100 = vmax.f32 %v1092, 0.0
        %v1101 = vmax.f32 %v1093, 0.0
        %v1102 = vmax.f32 %v1094, 0.0
        %v1103 = vmax.f32 %v1095, 0.0
        %v1104 = vmax.f32 %v1096, 0.0
        %v1105 = vmax.f32 %v1097, 0.0
        %v1106 = vmax.f32 %v1098, 0.0
        %v1107 = vmax.f32 %v1099, 0.0
        %v1108 = vmin.f32 %v1100, 6.0
        %v1109 = vmin.f32 %v1101, 6.0
        %v1110 = vmin.f32 %v1102, 6.0
        %v1111 = vmin.f32 %v1103, 6.0
        %v1112 = vmin.f32 %v1104, 6.0
        %v1113 = vmin.f32 %v1105, 6.0
        %v1114 = vmin.f32 %v1106, 6.0
        %v1115 = vmin.f32 %v1107, 6.0
        %v1116 = vld [vmem:[%s5] sm:$0xf]
        %v1117 = vpack.c.bf16 %v1110, %v1108
        %v1118 = vpack.c.bf16 %v1111, %v1109
        %v1119 = vpack.c.bf16 %v1114, %v1112
        %v1120 = vpack.c.bf16 %v1115, %v1113
        %v1122 = vsel %vm380, %v1116, 0
        %1124 = vmatpush.bf16.msra.mxu0 0
        %1125 = vmatpush.bf16.msra.mxu0 0
        %1126 = vmatpush.bf16.msra.mxu0 0
        %1127 = vmatpush.bf16.msra.mxu0 0
        %1128 = vmatpush.bf16.msra.mxu0 0
        %1129 = vmatpush.bf16.msra.mxu0 0
        %1130 = vmatpush.bf16.msra.mxu0 %v1119
        %1131 = vmatpush.bf16.msra.mxu0 %v1117
        %1132 = vmatmul.bf16.gmra.mxu0 %v1122
        %v1133 = vpop.f32.mrf.mxu0
        %v1134 = vadd.f32 0.0, %v1133
        %v1135 = vpop.f32.mrf.mxu0
        %1136 = vdwg.mxu0
        %1137 = vmatpush.bf16.msra.mxu0 0
        %1138 = vmatpush.bf16.msra.mxu0 0
        %1139 = vmatpush.bf16.msra.mxu0 0
        %1140 = vmatpush.bf16.msra.mxu0 0
        %1141 = vmatpush.bf16.msra.mxu0 0
        %1142 = vmatpush.bf16.msra.mxu0 0
        %1143 = vmatpush.bf16.msra.mxu0 %v1120
        %1144 = vmatpush.bf16.msra.mxu0 %v1118
        %1145 = vmatmul.bf16.gmra.mxu0 %v1122
        %v1146 = vpop.f32.mrf.mxu0
        %v1147 = vadd.f32 0.0, %v1146
        %v1148 = vpop.f32.mrf.mxu0
        %1149 = vdwg.mxu0
        %1150 = vrot.lane.b32.xlu0 %v1134, 112
        %v1151 = vpop.permute.xlu0 %1150
        %1152 = vrot.lane.b32.xlu0 %v1147, 112
        %v1153 = vpop.permute.xlu0 %1152
        %v1154 = vsel %vm970, %v1151, %v1153
        %1155 = vset.pattern.permute.xlu0 11
        %1156 = vperm.xlu0 %1155, %v362
        %v1157 = vpop.permute.xlu0 %1156
        %v1159 = vadd.f32 %v1154, %v1157
        %v1160 = vadd.f32 %v1159, %v366
        %1161 = vst [vmem:[%s352] sm:$0xff] %v1160
        %s1162 = sand.u32 %s195, 1
        %s1163 = scalar_lea.sflag [#allocation4], %s1162
        %s1164 = sand.u32 %s195, 1
        %s1165 = smul.addr %s1164, 8
        %s1166 = scalar_lea.vmem [#allocation7], %s1165
        // Predicated region
        $region53: #{tpu_custom_call.1} parent=43 // pred_check
          %p1167 = pneg %p205
        $region54: #{tpu_custom_call.1} parent=43 // pred_check_branch
          %1169 = sbr.rel (%p1167) target = $region56
        $region55: #{tpu_custom_call.1} parent=43 // pred_region
          %1171 = vsyncadd %s1163, 0
          %s1172 = smul.addr %s31, 2
          %s1173 = sadd.s32 %s30, %s1172
          %s1174 = smul.addr %s1173, 8
          %s1175 = scalar_lea.hbm %s6, %s1174
          %s1177 = sshll.u32 %s1166, 4
          %s1178 = int_to_ptr.vmem [resolvable:$true] %s1177
          %s1179 = sshll.u32 %s1175, 4
          %s1180 = int_to_ptr.hbm [resolvable:$true] %s1179
          %1182 = dma.vmem_to_hbm [thread:$0]  %s1178, 128, %s1180, %s1163
        $region56: #{tpu_custom_call.1} parent=43 // pred_fallthru
          _
      $region44: #{tpu_custom_call.1} parent=5 // pred_fallthru
        _
      %p1183 = scmp.le.s32.totalorder 2, %s21
      // Predicated region
      $region57: #{tpu_custom_call.1} parent=5 // pred_check
        %p1184 = pneg %p1183
      $region58: #{tpu_custom_call.1} parent=5 // pred_check_branch
        %1186 = sbr.rel (%p1184) target = $region60
      $region59: #{tpu_custom_call.1} parent=5 // pred_region
        %s1187 = ssub.s32 %s21, 2
        // Predicated region
        $region61: #{tpu_custom_call.1} parent=59 // pred_check
          %p1188 = pneg %p211
        $region62: #{tpu_custom_call.1} parent=59 // pred_check_branch
          %1190 = sbr.rel (%p1188) target = $region64
        $region63: #{tpu_custom_call.1} parent=59 // pred_region
          %s1191 = sand.u32 %s196, 1
          %s1192 = scalar_lea.sflag [#allocation4], %s1191
          %s1193 = sand.u32 %s196, 1
          %s1194 = smul.addr %s1193, 8
          %s1195 = scalar_lea.vmem [#allocation7], %s1194
          %1197 = dma.done %s1192, 128
        $region64: #{tpu_custom_call.1} parent=59 // pred_fallthru
          _
      $region60: #{tpu_custom_call.1} parent=5 // pred_fallthru
        _
    $region6: #{tpu_custom_call.1} parent=1 // loop_footer
      %s25 = sadd.s32 1, %s21
    $region7: #{tpu_custom_call.1} parent=1 // loop_footer_branch
      %20 = sbr.rel target = $region3
    $region8: #{tpu_custom_call.1} parent=1 // loop_exit
      _
    %1198 = vsyncpa [#allocation3], 1
    %s1199 = scalar_lea.sflag [#allocation3], 1
    %1200 = vsyncpa %s1199, 1
    %1201 = vsyncpa [#allocation6], 1
    %s1202 = scalar_lea.sflag [#allocation6], 1
    %1203 = vsyncpa %s1202, 1
    %1204 = vsyncpa [#allocation4], 1
    %s1205 = scalar_lea.sflag [#allocation4], 1
    %1206 = vsyncpa %s1205, 1

// kernel: tpu_custom_call.1
$region0: #{tpu_custom_call.1}
  #allocation0 [shape = 'u32[]', space=smem, size = 0x4, offset = 0x4, fixed_abs, tag = 'smem constant byte address 0x4 - core index']
  #allocation1 [shape = 'u32[72,128]{1,0:T(1,128)}', space=vmem, size = 0x9000, scoped, tag = 'internal scratch']
  %s0 = inlined_call_operand.vmem [shape: f32[2,8,256], index: 0, kind: input, shape index: {}]
  %s1 = inlined_call_operand.hbm [shape: f32[2,2,8,16], index: 1, kind: input, shape index: {}]
  %s2 = inlined_call_operand.hbm [shape: f32[2,2,8,16], index: 2, kind: input, shape index: {}]
  %s3 = inlined_call_operand.vmem [shape: f32[32,16], index: 3, kind: input, shape index: {}]
  %s4 = inlined_call_operand.vmem [shape: bf16[32,8], index: 4, kind: input, shape index: {}]
  %s5 = inlined_call_operand.vmem [shape: bf16[8,32], index: 5, kind: input, shape index: {}]
  %s6 = inlined_call_operand.hbm [shape: f32[2,8,256], index: 6, kind: output, shape index: {}]
  %s7 = sld [smem:[#allocation0]]
  $region65: #{tpu_custom_call.1} parent=0
    _
  %s9 = ssub.s32 1, %s7
  %s10 = scalar_select 0, %s9, %s7
  $region1: #{tpu_custom_call.1} parent=0
    #allocation2 [shape = 'u8[8192]{0}', space=vmem, size = 0x2000, scoped, tag = 'input window, operand 1']
    #allocation3 [shape = 's32[2]{0}', space=sflag, size = 0x8, scoped, tag = 'scoped memory for tpu_custom_call.1']
    #allocation4 [shape = 's32[2]{0}', space=sflag, size = 0x8, scoped, tag = 'scoped memory for tpu_custom_call.1']
    #allocation5 [shape = 'u8[8192]{0}', space=vmem, size = 0x2000, scoped, tag = 'input window, operand 2']
    #allocation6 [shape = 's32[2]{0}', space=sflag, size = 0x8, scoped, tag = 'scoped memory for tpu_custom_call.1']
    #allocation7 [shape = 'u8[8192]{0}', space=vmem, size = 0x2000, scoped, tag = 'output window, operand 0']
    %11 = vsyncpa [#allocation3], 0
    %s12 = scalar_lea.sflag [#allocation3], 1
    %13 = vsyncpa %s12, 0
    %14 = vsyncpa [#allocation6], 0
    %s15 = scalar_lea.sflag [#allocation6], 1
    %16 = vsyncpa %s15, 0
    %17 = vsyncpa [#allocation4], 0
    %s18 = scalar_lea.sflag [#allocation4], 1
    %19 = vsyncpa %s18, 0
    loop: start=0, step=1, limit=6
    $region2: #{tpu_custom_call.1} parent=1 // loop_pre_header
      _
    $region3: #{tpu_custom_call.1} parent=1 // loop_header
      %s21 = sphi 0, %s25
      %p22 = scmp.ge.s32.totalorder %s21, 6
      %s28 = sphi 0, %s40
      %s29 = sphi 0, %s36
      %s30 = sphi 0, %s28
      %s31 = sphi 0, %s29
      %s32 = sphi 0, %s30
      %s33 = sphi 0, %s31
      %s45 = sphi 0, %s47
      %s48 = sphi 0, %s45
      %s49 = sphi 0, %s48
      %s65 = sphi 0, %s49
      %s73 = sphi 0, %s75
      %s76 = sphi 0, %s73
      %s77 = sphi 0, %s76
      %s93 = sphi 0, %s77
      %s101 = sphi 0, %s103
      %s104 = sphi 0, %s101
      %s105 = sphi 0, %s104
      %s121 = sphi 0, %s105
      %s125 = sphi 0, %s125
      %s127 = sphi 0, %s125
      %s128 = sphi 0, %s127
      %s142 = sphi 0, %s128
      %s146 = sphi 0, %s146
      %s148 = sphi 0, %s146
      %s149 = sphi 0, %s148
      %s163 = sphi 0, %s149
      %s167 = sphi 0, %s167
      %s169 = sphi 0, %s167
      %s170 = sphi 0, %s169
      %s184 = sphi 0, %s170
      %s192 = sphi 0, %s194
      %s195 = sphi 0, %s192
      %s196 = sphi 0, %s195
      %s212 = sphi 0, %s196
    $region4: #{tpu_custom_call.1} parent=1 // loop_header_branch
      %24 = sbr.rel (%p22) target = $region8
    $region5: #{tpu_custom_call.1} parent=1 // loop_body
      %s26 = ssub.s32 %s21, 1
      %s27 = ssub.s32 %s21, 2
      %s34 = sadd.s32 1, %s29
      %p35 = scmp.ge.s32.totalorder %s34, 2
      %s36 = scalar_select %p35, 0, %s34
      %s37 = sadd.s32 1, %s28
      %s38 = scalar_select %p35, %s37, %s28
      %p39 = scmp.ge.s32.totalorder %s38, 2
      %s40 = scalar_select %p39, 0, %s38
      %s41 = ssub.s32 %s29, %s36
      %s42 = ssub.s32 %s28, %s40
      %s43 = sor.u32 %s41, %s42
      %p44 = scmp.eq.s32.totalorder %s43, 0
      %s46 = sadd.s32 %s45, 1
      %s47 = scalar_select %p44, %s45, %s46
      %p50 = pneg %p44
      %p51 = scmp.eq.s32.totalorder %s21, 3
      %p52 = por %p50, %p51
      %p53 = scmp.ne.s32.totalorder %s45, %s48
      %p54 = scmp.eq.s32.totalorder %s21, 0
      %p55 = por %p53, %p54
      %p56 = scmp.ne.s32.totalorder %s45, %s48
      %p57 = scmp.eq.s32.totalorder %s26, 3
      %p58 = por %p56, %p57
      %p59 = scmp.ne.s32.totalorder %s48, %s49
      %p60 = scmp.eq.s32.totalorder %s26, 0
      %p61 = por %p59, %p60
      %p62 = scmp.ne.s32.totalorder %s48, %s49
      %p63 = scmp.eq.s32.totalorder %s27, 3
      %p64 = por %p62, %p63
      %p66 = scmp.ne.s32.totalorder %s49, %s65
      %p67 = scmp.eq.s32.totalorder %s27, 0
      %p68 = por %p66, %p67
      %s69 = ssub.s32 %s29, %s36
      %s70 = ssub.s32 %s28, %s40
      %s71 = sor.u32 %s69, %s70
      %p72 = scmp.eq.s32.totalorder %s71, 0
      %s74 = sadd.s32 %s73, 1
      %s75 = scalar_select %p72, %s73, %s74
      %p78 = pneg %p72
      %p79 = scmp.eq.s32.totalorder %s21, 3
      %p80 = por %p78, %p79
      %p81 = scmp.ne.s32.totalorder %s73, %s76
      %p82 = scmp.eq.s32.totalorder %s21, 0
      %p83 = por %p81, %p82
      %p84 = scmp.ne.s32.totalorder %s73, %s76
      %p85 = scmp.eq.s32.totalorder %s26, 3
      %p86 = por %p84, %p85
      %p87 = scmp.ne.s32.totalorder %s76, %s77
      %p88 = scmp.eq.s32.totalorder %s26, 0
      %p89 = por %p87, %p88
      %p90 = scmp.ne.s32.totalorder %s76, %s77
      %p91 = scmp.eq.s32.totalorder %s27, 3
      %p92 = por %p90, %p91
      %p94 = scmp.ne.s32.totalorder %s77, %s93
      %p95 = scmp.eq.s32.totalorder %s27, 0
      %p96 = por %p94, %p95
      %s97 = ssub.s32 %s29, %s36
      %s98 = ssub.s32 %s28, %s40
      %s99 = sor.u32 %s97, %s98
      %p100 = scmp.eq.s32.totalorder %s99, 0
      %s102 = sadd.s32 %s101, 1
      %s103 = scalar_select %p100, %s101, %s102
      %p106 = pneg %p100
      %p107 = scmp.eq.s32.totalorder %s21, 3
      %p108 = por %p106, %p107
      %p109 = scmp.ne.s32.totalorder %s101, %s104
      %p110 = scmp.eq.s32.totalorder %s21, 0
      %p111 = por %p109, %p110
      %p112 = scmp.ne.s32.totalorder %s101, %s104
      %p113 = scmp.eq.s32.totalorder %s26, 3
      %p114 = por %p112, %p113
      %p115 = scmp.ne.s32.totalorder %s104, %s105
      %p116 = scmp.eq.s32.totalorder %s26, 0
      %p117 = por %p115, %p116
      %p118 = scmp.ne.s32.totalorder %s104, %s105
      %p119 = scmp.eq.s32.totalorder %s27, 3
      %p120 = por %p118, %p119
      %p122 = scmp.ne.s32.totalorder %s105, %s121
      %p123 = scmp.eq.s32.totalorder %s27, 0
      %p124 = por %p122, %p123
      %s126 = sadd.s32 %s125, 1
      %p129 = scmp.eq.s32.totalorder %s21, 3
      %p130 = scmp.ne.s32.totalorder %s125, %s127
      %p131 = scmp.eq.s32.totalorder %s21, 0
      %p132 = por %p130, %p131
      %p133 = scmp.ne.s32.totalorder %s125, %s127
      %p134 = scmp.eq.s32.totalorder %s26, 3
      %p135 = por %p133, %p134
      %p136 = scmp.ne.s32.totalorder %s127, %s128
      %p137 = scmp.eq.s32.totalorder %s26, 0
      %p138 = por %p136, %p137
      %p139 = scmp.ne.s32.totalorder %s127, %s128
      %p140 = scmp.eq.s32.totalorder %s27, 3
      %p141 = por %p139, %p140
      %p143 = scmp.ne.s32.totalorder %s128, %s142
      %p144 = scmp.eq.s32.totalorder %s27, 0
      %p145 = por %p143, %p144
      %s147 = sadd.s32 %s146, 1
      %p150 = scmp.eq.s32.totalorder %s21, 3
      %p151 = scmp.ne.s32.totalorder %s146, %s148
      %p152 = scmp.eq.s32.totalorder %s21, 0
      %p153 = por %p151, %p152
      %p154 = scmp.ne.s32.totalorder %s146, %s148
      %p155 = scmp.eq.s32.totalorder %s26, 3
      %p156 = por %p154, %p155
      %p157 = scmp.ne.s32.totalorder %s148, %s149
      %p158 = scmp.eq.s32.totalorder %s26, 0
      %p159 = por %p157, %p158
      %p160 = scmp.ne.s32.totalorder %s148, %s149
      %p161 = scmp.eq.s32.totalorder %s27, 3
      %p162 = por %p160, %p161
      %p164 = scmp.ne.s32.totalorder %s149, %s163
      %p165 = scmp.eq.s32.totalorder %s27, 0
      %p166 = por %p164, %p165
      %s168 = sadd.s32 %s167, 1
      %p171 = scmp.eq.s32.totalorder %s21, 3
      %p172 = scmp.ne.s32.totalorder %s167, %s169
      %p173 = scmp.eq.s32.totalorder %s21, 0
      %p174 = por %p172, %p173
      %p175 = scmp.ne.s32.totalorder %s167, %s169
      %p176 = scmp.eq.s32.totalorder %s26, 3
      %p177 = por %p175, %p176
      %p178 = scmp.ne.s32.totalorder %s169, %s170
      %p179 = scmp.eq.s32.totalorder %s26, 0
      %p180 = por %p178, %p179
      %p181 = scmp.ne.s32.totalorder %s169, %s170
      %p182 = scmp.eq.s32.totalorder %s27, 3
      %p183 = por %p181, %p182
      %p185 = scmp.ne.s32.totalorder %s170, %s184
      %p186 = scmp.eq.s32.totalorder %s27, 0
      %p187 = por %p185, %p186
      %s188 = ssub.s32 %s29, %s36
      %s189 = ssub.s32 %s28, %s40
      %s190 = sor.u32 %s188, %s189
      %p191 = scmp.eq.s32.totalorder %s190, 0
      %s193 = sadd.s32 %s192, 1
      %s194 = scalar_select %p191, %s192, %s193
      %p197 = pneg %p191
      %p198 = scmp.eq.s32.totalorder %s21, 3
      %p199 = por %p197, %p198
      %p200 = scmp.ne.s32.totalorder %s192, %s195
      %p201 = scmp.eq.s32.totalorder %s21, 0
      %p202 = por %p200, %p201
      %p203 = scmp.ne.s32.totalorder %s192, %s195
      %p204 = scmp.eq.s32.totalorder %s26, 3
      %p205 = por %p203, %p204
      %p206 = scmp.ne.s32.totalorder %s195, %s196
      %p207 = scmp.eq.s32.totalorder %s26, 0
      %p208 = por %p206, %p207
      %p209 = scmp.ne.s32.totalorder %s195, %s196
      %p210 = scmp.eq.s32.totalorder %s27, 3
      %p211 = por %p209, %p210
      %p213 = scmp.ne.s32.totalorder %s196, %s212
      %p214 = scmp.eq.s32.totalorder %s27, 0
      %p215 = por %p213, %p214
      %p216 = scmp.le.s32.totalorder 1, %s21
      %p217 = scmp.lt.s32.totalorder %s21, 5
      %p218 = pnand %p216, %p217
      %p219 = pneg %p218
      // Predicated region
      $region9: #{tpu_custom_call.1} parent=5 // pred_check
        _
      $region10: #{tpu_custom_call.1} parent=5 // pred_check_branch
        %221 = sbr.rel (%p218) target = $region12
      $region11: #{tpu_custom_call.1} parent=5 // pred_region
        %s222 = ssub.s32 %s21, 1
        // Predicated region
        $region13: #{tpu_custom_call.1} parent=11 // pred_check
          %p223 = pneg %p138
        $region14: #{tpu_custom_call.1} parent=11 // pred_check_branch
          %225 = sbr.rel (%p223) target = $region16
        $region15: #{tpu_custom_call.1} parent=11 // pred_region
          _
        $region16: #{tpu_custom_call.1} parent=11 // pred_fallthru
          _
        // Predicated region
        $region17: #{tpu_custom_call.1} parent=11 // pred_check
          %p226 = pneg %p159
        $region18: #{tpu_custom_call.1} parent=11 // pred_check_branch
          %228 = sbr.rel (%p226) target = $region20
        $region19: #{tpu_custom_call.1} parent=11 // pred_region
          _
        $region20: #{tpu_custom_call.1} parent=11 // pred_fallthru
          _
        // Predicated region
        $region21: #{tpu_custom_call.1} parent=11 // pred_check
          %p229 = pneg %p180
        $region22: #{tpu_custom_call.1} parent=11 // pred_check_branch
          %231 = sbr.rel (%p229) target = $region24
        $region23: #{tpu_custom_call.1} parent=11 // pred_region
          _
        $region24: #{tpu_custom_call.1} parent=11 // pred_fallthru
          _
      $region12: #{tpu_custom_call.1} parent=5 // pred_fallthru
        _
      %p232 = scmp.lt.s32.totalorder %s21, 4
      // Predicated region
      $region25: #{tpu_custom_call.1} parent=5 // pred_check
        %p233 = pneg %p232
      $region26: #{tpu_custom_call.1} parent=5 // pred_check_branch
        %235 = sbr.rel (%p233) target = $region28
      $region27: #{tpu_custom_call.1} parent=5 // pred_region
        // Predicated region
        $region29: #{tpu_custom_call.1} parent=27 // pred_check
          %p236 = pneg %p55
        $region30: #{tpu_custom_call.1} parent=27 // pred_check_branch
          %238 = sbr.rel (%p236) target = $region32
        $region31: #{tpu_custom_call.1} parent=27 // pred_region
          %p239 = scmp.lt.s32.totalorder %s29, 1
          %s240 = scalar_select %p239, %s29, 1
          %p241 = scmp.lt.s32.totalorder %s28, 1
          %s242 = scalar_select %p241, %s28, 1
          %s243 = smul.addr %s240, 2
          %s244 = sadd.s32 %s242, %s243
          %s245 = smul.addr %s244, 8
          %s246 = scalar_lea.vmem %s0, %s245
        $region32: #{tpu_custom_call.1} parent=27 // pred_fallthru
          _
        // Predicated region
        $region33: #{tpu_custom_call.1} parent=27 // pred_check
          %p247 = pneg %p83
        $region34: #{tpu_custom_call.1} parent=27 // pred_check_branch
          %249 = sbr.rel (%p247) target = $region36
        $region35: #{tpu_custom_call.1} parent=27 // pred_region
          %s250 = sand.u32 %s73, 1
          %s251 = scalar_lea.sflag [#allocation3], %s250
          %s252 = sand.u32 %s73, 1
          %s253 = smul.addr %s252, 8
          %s254 = scalar_lea.vmem [#allocation2], %s253
          %256 = vsyncadd %s251, 0
          %s257 = smul.addr %s29, 2
          %s258 = sadd.s32 %s28, %s257
          %s259 = smul.addr %s258, 8
          %s260 = scalar_lea.hbm %s1, %s259
          %s262 = sshll.u32 %s260, 4
          %s263 = int_to_ptr.hbm [resolvable:$true] %s262
          %s264 = sshll.u32 %s254, 4
          %s265 = int_to_ptr.vmem [resolvable:$true] %s264
          %267 = dma.hbm_to_vmem [thread:$0]  %s263, 128, %s265, %s251
        $region36: #{tpu_custom_call.1} parent=27 // pred_fallthru
          _
        // Predicated region
        $region37: #{tpu_custom_call.1} parent=27 // pred_check
          %p268 = pneg %p111
        $region38: #{tpu_custom_call.1} parent=27 // pred_check_branch
          %270 = sbr.rel (%p268) target = $region40
        $region39: #{tpu_custom_call.1} parent=27 // pred_region
          %s271 = sand.u32 %s101, 1
          %s272 = scalar_lea.sflag [#allocation6], %s271
          %s273 = sand.u32 %s101, 1
          %s274 = smul.addr %s273, 8
          %s275 = scalar_lea.vmem [#allocation5], %s274
          %277 = vsyncadd %s272, 0
          %s278 = smul.addr %s29, 2
          %s279 = sadd.s32 %s28, %s278
          %s280 = smul.addr %s279, 8
          %s281 = scalar_lea.hbm %s2, %s280
          %s283 = sshll.u32 %s281, 4
          %s284 = int_to_ptr.hbm [resolvable:$true] %s283
          %s285 = sshll.u32 %s275, 4
          %s286 = int_to_ptr.vmem [resolvable:$true] %s285
          %288 = dma.hbm_to_vmem [thread:$0]  %s284, 128, %s286, %s272
        $region40: #{tpu_custom_call.1} parent=27 // pred_fallthru
          _
      $region28: #{tpu_custom_call.1} parent=5 // pred_fallthru
        _
      %p289 = scmp.le.s32.totalorder 1, %s21
      %p290 = scmp.lt.s32.totalorder %s21, 5
      %p291 = pnand %p289, %p290
      %p292 = pneg %p291
      // Predicated region
      $region41: #{tpu_custom_call.1} parent=5 // pred_check
        _
      $region42: #{tpu_custom_call.1} parent=5 // pred_check_branch
        %294 = sbr.rel (%p291) target = $region44
      $region43: #{tpu_custom_call.1} parent=5 // pred_region
        %s295 = ssub.s32 %s21, 1
        %s296 = sand.u32 %s76, 1
        %s297 = scalar_lea.sflag [#allocation3], %s296
        %s298 = sand.u32 %s76, 1
        %s299 = smul.addr %s298, 8
        %s300 = scalar_lea.vmem [#allocation2], %s299
        // Predicated region
        $region45: #{tpu_custom_call.1} parent=43 // pred_check
          %p301 = pneg %p89
        $region46: #{tpu_custom_call.1} parent=43 // pred_check_branch
          %303 = sbr.rel (%p301) target = $region48
        $region47: #{tpu_custom_call.1} parent=43 // pred_region
          %305 = dma.done %s297, 128
        $region48: #{tpu_custom_call.1} parent=43 // pred_fallthru
          _
        %s306 = sand.u32 %s104, 1
        %s307 = scalar_lea.sflag [#allocation6], %s306
        %s308 = sand.u32 %s104, 1
        %s309 = smul.addr %s308, 8
        %s310 = scalar_lea.vmem [#allocation5], %s309
        // Predicated region
        $region49: #{tpu_custom_call.1} parent=43 // pred_check
          %p311 = pneg %p117
        $region50: #{tpu_custom_call.1} parent=43 // pred_check_branch
          %313 = sbr.rel (%p311) target = $region52
        $region51: #{tpu_custom_call.1} parent=43 // pred_region
          %315 = dma.done %s307, 128
        $region52: #{tpu_custom_call.1} parent=43 // pred_fallthru
          _
        %p316 = scmp.lt.s32.totalorder %s31, 1
        %s317 = scalar_select %p316, %s31, 1
        %p318 = scmp.lt.s32.totalorder %s30, 1
        %s319 = scalar_select %p318, %s30, 1
        %s320 = smul.addr %s317, 2
        %s321 = sadd.s32 %s319, %s320
        %s322 = smul.addr %s321, 8
        %s323 = scalar_lea.vmem %s0, %s322
        %p324 = pneg %p61
        %p325 = pneg %p58
        %s326 = sand.u32 %s76, 1
        %s327 = scalar_lea.sflag [#allocation3], %s326
        %s328 = sand.u32 %s76, 1
        %s329 = smul.addr %s328, 8
        %s330 = scalar_lea.vmem [#allocation2], %s329
        %p331 = pneg %p89
        %p332 = pneg %p86
        %s333 = sand.u32 %s104, 1
        %s334 = scalar_lea.sflag [#allocation6], %s333
        %s335 = sand.u32 %s104, 1
        %s336 = smul.addr %s335, 8
        %s337 = scalar_lea.vmem [#allocation5], %s336
        %p338 = pneg %p117
        %p339 = pneg %p114
        %p340 = pneg %p138
        %p341 = pneg %p135
        %p342 = pneg %p159
        %p343 = pneg %p156
        %p344 = pneg %p180
        %p345 = pneg %p177
        %p346 = pneg %p208
        %p347 = pneg %p205
        %s348 = sand.u32 %s195, 1
        %s349 = scalar_lea.sflag [#allocation4], %s348
        %s350 = sand.u32 %s195, 1
        %s351 = smul.addr %s350, 8
        %s352 = scalar_lea.vmem [#allocation7], %s351
        %p353 = scmp.lt.s32.totalorder %s31, 1
        %s354 = scalar_select %p353, %s31, 1
        %p355 = scmp.lt.s32.totalorder %s30, 1
        %s356 = scalar_select %p355, %s30, 1
        %s357 = smul.addr %s354, 2
        %s358 = sadd.s32 %s356, %s357
        %s359 = smul.addr %s358, 8
        %s360 = scalar_lea.vmem %s0, %s359
        %v362 = vld [vmem:[%s3] sm:$0xff]
        %v363 = vld [vmem:[%s3 + $0x8] sm:$0xff]
        %v364 = vld [vmem:[%s3 + $0x10] sm:$0xff]
        %v365 = vld [vmem:[%s3 + $0x18] sm:$0xff]
        %v366 = vld [vmem:[%s360] sm:$0xff]
        %v367 = vld [vmem:[%s300] sm:$0xff]
        %v368 = vld [vmem:[%s310] sm:$0xff]
        %370 = vrot.lane.b32.xlu0 %v366, 16
        %v371 = vpop.permute.xlu0 %370
        %374 = vrot.lane.b32.xlu0 %v368, 16
        %v375 = vpop.permute.xlu0 %374
        %vm377 = vcmask 130048
        %v378 = vsel %vm377, %v367, %v371
        %v379 = vsel %vm377, %v371, %v375
        %vm380 = vcmask 261120
        %v381 = vsel %vm380, %v379, 0.0
        %v382 = vlaneseq
        %v383 = vand.u32 %v382, 127
        %v384 = vadd.s32 %v383, 128
        %vm385 = vcmp.lt.s32.totalorder %v383, 0
        %v386 = vsub.s32 0, %v383
        %v387 = vsel %vm385, %v386, %v383
        %v388 = vshrl.u32 %v387, 4
        %v389 = vand.u32 %v387, 15
        %v390 = vsub.s32 0, %v389
        %v391 = vsel %vm385, %v390, %v389
        %vm392 = vcmp.lt.s32.totalorder %v384, 0
        %v393 = vsub.s32 0, %v384
        %v394 = vsel %vm392, %v393, %v384
        %v395 = vshrl.u32 %v394, 4
        %v396 = vand.u32 %v394, 15
        %v397 = vsub.s32 0, %v396
        %v398 = vsel %vm392, %v397, %v396
        %vm399 = vcmp.ne.s32.totalorder %v391, 0
        %vm400 = vcmp.ne.s32.totalorder %v398, 0
        %vm401 = vcmp.lt.s32.totalorder %v391, 0
        %vm402 = vcmp.lt.s32.totalorder %v398, 0
        %vm403 = vmand %vm401, %vm399
        %vm404 = vmand %vm402, %vm400
        %v405 = vadd.s32 %v391, 16
        %v406 = vadd.s32 %v398, 16
        %v407 = vsel %vm403, %v405, %v391
        %v408 = vsel %vm404, %v406, %v398
        %v409 = vld [vmem:[%s4] sm:$0xf]
        %v410 = vld [vmem:[%s4 + $0x4] sm:$0xf]
        %v411 = vld [vmem:[%s4 + $0x8] sm:$0xf]
        %v412 = vld [vmem:[%s4 + $0xc] sm:$0xf]
        %v413 = vpack.c.bf16 %v378, %v378
        %v414 = vpack.c.bf16 %v381, %v381
        %416 = vset.pattern.permute.xlu0 9
        %417 = vperm.xlu0 %416, %v362
        %v418 = vpop.permute.xlu0 %417
        %421 = vset.pattern.permute.xlu0 9
        %422 = vperm.xlu0 %421, %v363
        %v423 = vpop.permute.xlu0 %422
        %426 = vset.pattern.permute.xlu0 9
        %427 = vperm.xlu0 %426, %v364
        %v428 = vpop.permute.xlu0 %427
        %431 = vset.pattern.permute.xlu0 9
        %432 = vperm.xlu0 %431, %v365
        %v433 = vpop.permute.xlu0 %432
        %v439 = vunpack.c.l.b16 %v409
        %v440 = vunpack.c.l.b16 %v410
        %v441 = vunpack.c.l.b16 %v411
        %v442 = vunpack.c.l.b16 %v412
        %v443 = vpack.c.b16 %v440, %v439
        %v444 = vpack.c.b16 %v442, %v441
        %vm445 = vcmask 64512
        %v447 = vsel %vm445, %v443, 0
        %v450 = vsel %vm445, %v444, 0
        %vm452 = vcmask 1043456
        %v454 = vsel %vm452, %v413, 0
        %v457 = vsel %vm452, %v414, 0
        %459 = vmatpush.bf16.msra.mxu0 0
        %460 = vmatpush.bf16.msra.mxu0 0
        %461 = vmatpush.bf16.msra.mxu0 0
        %462 = vmatpush.bf16.msra.mxu0 0
        %463 = vmatpush.bf16.msra.mxu0 0
        %464 = vmatpush.bf16.msra.mxu0 0
        %465 = vmatpush.bf16.msra.mxu0 0
        %466 = vmatpush.bf16.msra.mxu0 %v454
        %467 = vmatmul.bf16.gmra.mxu0 %v447
        %v468 = vpop.f32.mrf.mxu0
        %v469 = vadd.f32 %v418, %v468
        %v470 = vpop.f32.mrf.mxu0
        %v471 = vadd.f32 %v423, %v470
        %472 = vmatmul.bf16.gmra.mxu0 %v450
        %v473 = vpop.f32.mrf.mxu0
        %v474 = vadd.f32 %v428, %v473
        %v475 = vpop.f32.mrf.mxu0
        %v476 = vadd.f32 %v433, %v475
        %477 = vdwg.mxu0
        %478 = vmatpush.bf16.msra.mxu0 0
        %479 = vmatpush.bf16.msra.mxu0 0
        %480 = vmatpush.bf16.msra.mxu0 0
        %481 = vmatpush.bf16.msra.mxu0 0
        %482 = vmatpush.bf16.msra.mxu0 0
        %483 = vmatpush.bf16.msra.mxu0 0
        %484 = vmatpush.bf16.msra.mxu0 0
        %485 = vmatpush.bf16.msra.mxu0 %v457
        %486 = vmatmul.bf16.gmra.mxu0 %v447
        %v487 = vpop.f32.mrf.mxu0
        %v488 = vadd.f32 %v418, %v487
        %v489 = vpop.f32.mrf.mxu0
        %v490 = vadd.f32 %v423, %v489
        %491 = vmatmul.bf16.gmra.mxu0 %v450
        %v492 = vpop.f32.mrf.mxu0
        %v493 = vadd.f32 %v428, %v492
        %v494 = vpop.f32.mrf.mxu0
        %v495 = vadd.f32 %v433, %v494
        %496 = vdwg.mxu0
        %v497 = vmax.f32 %v469, 0.0
        %v498 = vmax.f32 %v488, 0.0
        %v499 = vmax.f32 %v471, 0.0
        %v500 = vmax.f32 %v490, 0.0
        %v501 = vmax.f32 %v474, 0.0
        %v502 = vmax.f32 %v493, 0.0
        %v503 = vmax.f32 %v476, 0.0
        %v504 = vmax.f32 %v495, 0.0
        %v505 = vmin.f32 %v497, 6.0
        %v506 = vmin.f32 %v498, 6.0
        %v507 = vmin.f32 %v499, 6.0
        %v508 = vmin.f32 %v500, 6.0
        %v509 = vmin.f32 %v501, 6.0
        %v510 = vmin.f32 %v502, 6.0
        %v511 = vmin.f32 %v503, 6.0
        %v512 = vmin.f32 %v504, 6.0
        %p513 = scmp.gt.s32.totalorder %s30, 0
        %s514 = scalar_select %p513, 1, 0
        %s515 = scvt.s32.f32 %s514
        %p516 = scmp.lt.s32.totalorder %s30, 1
        %s517 = scalar_select %p516, 1, 0
        %s518 = scvt.s32.f32 %s517
        %vm519 = vcmp.lt.s32.totalorder %v383, 16
        %vm520 = vcmp.lt.s32.totalorder %v384, 16
        %vm521 = vcmp.ge.s32.totalorder %v383, 144
        %vm522 = vcmp.ge.s32.totalorder %v384, 144
        %v523 = vstv %s518
        %v524 = vsel %vm521, %v523, 1.0
        %v525 = vsel %vm522, %v523, 1.0
        %v526 = vstv %s515
        %v527 = vsel %vm519, %v526, %v524
        %v528 = vsel %vm520, %v526, %v525
        %v529 = vmul.f32 %v505, %v527
        %v530 = vmul.f32 %v506, %v528
        %v531 = vmul.f32 %v507, %v527
        %v532 = vmul.f32 %v508, %v528
        %v533 = vmul.f32 %v509, %v527
        %v534 = vmul.f32 %v510, %v528
        %v535 = vmul.f32 %v511, %v527
        %v536 = vmul.f32 %v512, %v528
        %vm537 = vcmp.ne.s32.totalorder %v407, 0
        %vm538 = vcmp.ne.s32.totalorder %v408, 0
        %v539 = vsel %vm537, 1, 0
        %v540 = vsel %vm538, 1, 0
        %v541 = vcvt.s32.f32 %v539
        %v542 = vcvt.s32.f32 %v540
        %vm543 = vcmp.ne.s32.totalorder %v407, 15
        %vm544 = vcmp.ne.s32.totalorder %v408, 15
        %v545 = vsel %vm543, 1, 0
        %v546 = vsel %vm544, 1, 0
        %v547 = vcvt.s32.f32 %v545
        %v548 = vcvt.s32.f32 %v546
        %549 = vrot.lane.b32.xlu0 %v529, 17
        %v550 = vpop.permute.xlu0 %549
        %551 = vrot.lane.b32.xlu0 %v531, 17
        %v552 = vpop.permute.xlu0 %551
        %553 = vrot.lane.b32.xlu0 %v533, 17
        %v554 = vpop.permute.xlu0 %553
        %555 = vrot.lane.b32.xlu0 %v535, 17
        %v556 = vpop.permute.xlu0 %555
        %557 = vrot.lane.b32.xlu0 %v530, 17
        %v558 = vpop.permute.xlu0 %557
        %559 = vrot.lane.b32.xlu0 %v532, 17
        %v560 = vpop.permute.xlu0 %559
        %561 = vrot.lane.b32.xlu0 %v534, 17
        %v562 = vpop.permute.xlu0 %561
        %563 = vrot.lane.b32.xlu0 %v536, 17
        %v564 = vpop.permute.xlu0 %563
        %vm565 = vcmp.lt.s32.totalorder %v383, 17
        %v566 = vsel %vm565, %v550, %v558
        %v567 = vsel %vm565, %v552, %v560
        %v568 = vsel %vm565, %v554, %v562
        %v569 = vsel %vm565, %v556, %v564
        %v570 = vsel %vm565, %v558, %v550
        %v571 = vsel %vm565, %v560, %v552
        %v572 = vsel %vm565, %v562, %v554
        %v573 = vsel %vm565, %v564, %v556
        %574 = vset.pattern.permute.xlu0 0
        %575 = vperm.xlu0 %574, %v362
        %v576 = vpop.permute.xlu0 %575
        %578 = vset.pattern.permute.xlu0 0
        %579 = vperm.xlu0 %578, %v363
        %v580 = vpop.permute.xlu0 %579
        %582 = vset.pattern.permute.xlu0 0
        %583 = vperm.xlu0 %582, %v364
        %v584 = vpop.permute.xlu0 %583
        %586 = vset.pattern.permute.xlu0 0
        %587 = vperm.xlu0 %586, %v365
        %v588 = vpop.permute.xlu0 %587
        %v590 = vmul.f32 %v570, %v576
        %v591 = vmul.f32 %v566, %v576
        %v592 = vmul.f32 %v571, %v580
        %v593 = vmul.f32 %v567, %v580
        %v594 = vmul.f32 %v572, %v584
        %v595 = vmul.f32 %v568, %v584
        %v596 = vmul.f32 %v573, %v588
        %v597 = vmul.f32 %v569, %v588
        %v598 = vmul.f32 %v590, %v541
        %v599 = vmul.f32 %v591, %v542
        %v600 = vmul.f32 %v592, %v541
        %v601 = vmul.f32 %v593, %v542
        %v602 = vmul.f32 %v594, %v541
        %v603 = vmul.f32 %v595, %v542
        %v604 = vmul.f32 %v596, %v541
        %v605 = vmul.f32 %v597, %v542
        %606 = vrot.lane.b32.xlu0 %v529, 16
        %v607 = vpop.permute.xlu0 %606
        %608 = vrot.lane.b32.xlu0 %v531, 16
        %v609 = vpop.permute.xlu0 %608
        %610 = vrot.lane.b32.xlu0 %v533, 16
        %v611 = vpop.permute.xlu0 %610
        %612 = vrot.lane.b32.xlu0 %v535, 16
        %v613 = vpop.permute.xlu0 %612
        %614 = vrot.lane.b32.xlu0 %v530, 16
        %v615 = vpop.permute.xlu0 %614
        %616 = vrot.lane.b32.xlu0 %v532, 16
        %v617 = vpop.permute.xlu0 %616
        %618 = vrot.lane.b32.xlu0 %v534, 16
        %v619 = vpop.permute.xlu0 %618
        %620 = vrot.lane.b32.xlu0 %v536, 16
        %v621 = vpop.permute.xlu0 %620
        %v622 = vsel %vm519, %v607, %v615
        %v623 = vsel %vm519, %v609, %v617
        %v624 = vsel %vm519, %v611, %v619
        %v625 = vsel %vm519, %v613, %v621
        %v626 = vsel %vm519, %v615, %v607
        %v627 = vsel %vm519, %v617, %v609
        %v628 = vsel %vm519, %v619, %v611
        %v629 = vsel %vm519, %v621, %v613
        %630 = vset.pattern.permute.xlu0 1
        %631 = vperm.xlu0 %630, %v362
        %v632 = vpop.permute.xlu0 %631
        %634 = vset.pattern.permute.xlu0 1
        %635 = vperm.xlu0 %634, %v363
        %v636 = vpop.permute.xlu0 %635
        %638 = vset.pattern.permute.xlu0 1
        %639 = vperm.xlu0 %638, %v364
        %v640 = vpop.permute.xlu0 %639
        %642 = vset.pattern.permute.xlu0 1
        %643 = vperm.xlu0 %642, %v365
        %v644 = vpop.permute.xlu0 %643
        %v646 = vmul.f32 %v626, %v632
        %v647 = vmul.f32 %v622, %v632
        %v648 = vmul.f32 %v627, %v636
        %v649 = vmul.f32 %v623, %v636
        %v650 = vmul.f32 %v628, %v640
        %v651 = vmul.f32 %v624, %v640
        %v652 = vmul.f32 %v629, %v644
        %v653 = vmul.f32 %v625, %v644
        %v654 = vadd.f32 %v598, %v646
        %v655 = vadd.f32 %v599, %v647
        %v656 = vadd.f32 %v600, %v648
        %v657 = vadd.f32 %v601, %v649
        %v658 = vadd.f32 %v602, %v650
        %v659 = vadd.f32 %v603, %v651
        %v660 = vadd.f32 %v604, %v652
        %v661 = vadd.f32 %v605, %v653
        %662 = vrot.lane.b32.xlu0 %v529, 15
        %v663 = vpop.permute.xlu0 %662
        %664 = vrot.lane.b32.xlu0 %v531, 15
        %v665 = vpop.permute.xlu0 %664
        %666 = vrot.lane.b32.xlu0 %v533, 15
        %v667 = vpop.permute.xlu0 %666
        %668 = vrot.lane.b32.xlu0 %v535, 15
        %v669 = vpop.permute.xlu0 %668
        %670 = vrot.lane.b32.xlu0 %v530, 15
        %v671 = vpop.permute.xlu0 %670
        %672 = vrot.lane.b32.xlu0 %v532, 15
        %v673 = vpop.permute.xlu0 %672
        %674 = vrot.lane.b32.xlu0 %v534, 15
        %v675 = vpop.permute.xlu0 %674
        %676 = vrot.lane.b32.xlu0 %v536, 15
        %v677 = vpop.permute.xlu0 %676
        %vm678 = vcmp.lt.s32.totalorder %v383, 15
        %v679 = vsel %vm678, %v663, %v671
        %v680 = vsel %vm678, %v665, %v673
        %v681 = vsel %vm678, %v667, %v675
        %v682 = vsel %vm678, %v669, %v677
        %v683 = vsel %vm678, %v671, %v663
        %v684 = vsel %vm678, %v673, %v665
        %v685 = vsel %vm678, %v675, %v667
        %v686 = vsel %vm678, %v677, %v669
        %687 = vset.pattern.permute.xlu0 2
        %688 = vperm.xlu0 %687, %v362
        %v689 = vpop.permute.xlu0 %688
        %691 = vset.pattern.permute.xlu0 2
        %692 = vperm.xlu0 %691, %v363
        %v693 = vpop.permute.xlu0 %692
        %695 = vset.pattern.permute.xlu0 2
        %696 = vperm.xlu0 %695, %v364
        %v697 = vpop.permute.xlu0 %696
        %699 = vset.pattern.permute.xlu0 2
        %700 = vperm.xlu0 %699, %v365
        %v701 = vpop.permute.xlu0 %700
        %v703 = vmul.f32 %v683, %v689
        %v704 = vmul.f32 %v679, %v689
        %v705 = vmul.f32 %v684, %v693
        %v706 = vmul.f32 %v680, %v693
        %v707 = vmul.f32 %v685, %v697
        %v708 = vmul.f32 %v681, %v697
        %v709 = vmul.f32 %v686, %v701
        %v710 = vmul.f32 %v682, %v701
        %v711 = vmul.f32 %v703, %v547
        %v712 = vmul.f32 %v704, %v548
        %v713 = vmul.f32 %v705, %v547
        %v714 = vmul.f32 %v706, %v548
        %v715 = vmul.f32 %v707, %v547
        %v716 = vmul.f32 %v708, %v548
        %v717 = vmul.f32 %v709, %v547
        %v718 = vmul.f32 %v710, %v548
        %v719 = vadd.f32 %v654, %v711
        %v720 = vadd.f32 %v655, %v712
        %v721 = vadd.f32 %v656, %v713
        %v722 = vadd.f32 %v657, %v714
        %v723 = vadd.f32 %v658, %v715
        %v724 = vadd.f32 %v659, %v716
        %v725 = vadd.f32 %v660, %v717
        %v726 = vadd.f32 %v661, %v718
        %727 = vrot.lane.b32.xlu0 %v529, 1
        %v728 = vpop.permute.xlu0 %727
        %729 = vrot.lane.b32.xlu0 %v531, 1
        %v730 = vpop.permute.xlu0 %729
        %731 = vrot.lane.b32.xlu0 %v533, 1
        %v732 = vpop.permute.xlu0 %731
        %733 = vrot.lane.b32.xlu0 %v535, 1
        %v734 = vpop.permute.xlu0 %733
        %735 = vrot.lane.b32.xlu0 %v530, 1
        %v736 = vpop.permute.xlu0 %735
        %737 = vrot.lane.b32.xlu0 %v532, 1
        %v738 = vpop.permute.xlu0 %737
        %739 = vrot.lane.b32.xlu0 %v534, 1
        %v740 = vpop.permute.xlu0 %739
        %741 = vrot.lane.b32.xlu0 %v536, 1
        %v742 = vpop.permute.xlu0 %741
        %vm743 = vcmp.lt.s32.totalorder %v383, 1
        %v744 = vsel %vm743, %v728, %v736
        %v745 = vsel %vm743, %v730, %v738
        %v746 = vsel %vm743, %v732, %v740
        %v747 = vsel %vm743, %v734, %v742
        %v748 = vsel %vm743, %v736, %v728
        %v749 = vsel %vm743, %v738, %v730
        %v750 = vsel %vm743, %v740, %v732
        %v751 = vsel %vm743, %v742, %v734
        %752 = vset.pattern.permute.xlu0 3
        %753 = vperm.xlu0 %752, %v362
        %v754 = vpop.permute.xlu0 %753
        %756 = vset.pattern.permute.xlu0 3
        %757 = vperm.xlu0 %756, %v363
        %v758 = vpop.permute.xlu0 %757
        %760 = vset.pattern.permute.xlu0 3
        %761 = vperm.xlu0 %760, %v364
        %v762 = vpop.permute.xlu0 %761
        %764 = vset.pattern.permute.xlu0 3
        %765 = vperm.xlu0 %764, %v365
        %v766 = vpop.permute.xlu0 %765
        %v768 = vmul.f32 %v748, %v754
        %v769 = vmul.f32 %v744, %v754
        %v770 = vmul.f32 %v749, %v758
        %v771 = vmul.f32 %v745, %v758
        %v772 = vmul.f32 %v750, %v762
        %v773 = vmul.f32 %v746, %v762
        %v774 = vmul.f32 %v751, %v766
        %v775 = vmul.f32 %v747, %v766
        %v776 = vmul.f32 %v768, %v541
        %v777 = vmul.f32 %v769, %v542
        %v778 = vmul.f32 %v770, %v541
        %v779 = vmul.f32 %v771, %v542
        %v780 = vmul.f32 %v772, %v541
        %v781 = vmul.f32 %v773, %v542
        %v782 = vmul.f32 %v774, %v541
        %v783 = vmul.f32 %v775, %v542
        %v784 = vadd.f32 %v719, %v776
        %v785 = vadd.f32 %v720, %v777
        %v786 = vadd.f32 %v721, %v778
        %v787 = vadd.f32 %v722, %v779
        %v788 = vadd.f32 %v723, %v780
        %v789 = vadd.f32 %v724, %v781
        %v790 = vadd.f32 %v725, %v782
        %v791 = vadd.f32 %v726, %v783
        %792 = vset.pattern.permute.xlu0 4
        %793 = vperm.xlu0 %792, %v362
        %v794 = vpop.permute.xlu0 %793
        %796 = vset.pattern.permute.xlu0 4
        %797 = vperm.xlu0 %796, %v363
        %v798 = vpop.permute.xlu0 %797
        %800 = vset.pattern.permute.xlu0 4
        %801 = vperm.xlu0 %800, %v364
        %v802 = vpop.permute.xlu0 %801
        %804 = vset.pattern.permute.xlu0 4
        %805 = vperm.xlu0 %804, %v365
        %v806 = vpop.permute.xlu0 %805
        %v808 = vmul.f32 %v529, %v794
        %v809 = vmul.f32 %v530, %v794
        %v810 = vmul.f32 %v531, %v798
        %v811 = vmul.f32 %v532, %v798
        %v812 = vmul.f32 %v533, %v802
        %v813 = vmul.f32 %v534, %v802
        %v814 = vmul.f32 %v535, %v806
        %v815 = vmul.f32 %v536, %v806
        %v816 = vadd.f32 %v784, %v808
        %v817 = vadd.f32 %v785, %v809
        %v818 = vadd.f32 %v786, %v810
        %v819 = vadd.f32 %v787, %v811
        %v820 = vadd.f32 %v788, %v812
        %v821 = vadd.f32 %v789, %v813
        %v822 = vadd.f32 %v790, %v814
        %v823 = vadd.f32 %v791, %v815
        %824 = vrot.lane.b32.xlu0 %v529, 127
        %v825 = vpop.permute.xlu0 %824
        %826 = vrot.lane.b32.xlu0 %v531, 127
        %v827 = vpop.permute.xlu0 %826
        %828 = vrot.lane.b32.xlu0 %v533, 127
        %v829 = vpop.permute.xlu0 %828
        %830 = vrot.lane.b32.xlu0 %v535, 127
        %v831 = vpop.permute.xlu0 %830
        %832 = vrot.lane.b32.xlu0 %v530, 127
        %v833 = vpop.permute.xlu0 %832
        %834 = vrot.lane.b32.xlu0 %v532, 127
        %v835 = vpop.permute.xlu0 %834
        %836 = vrot.lane.b32.xlu0 %v534, 127
        %v837 = vpop.permute.xlu0 %836
        %838 = vrot.lane.b32.xlu0 %v536, 127
        %v839 = vpop.permute.xlu0 %838
        %vm840 = vcmp.lt.s32.totalorder %v383, 127
        %v841 = vsel %vm840, %v825, %v833
        %v842 = vsel %vm840, %v827, %v835
        %v843 = vsel %vm840, %v829, %v837
        %v844 = vsel %vm840, %v831, %v839
        %v845 = vsel %vm840, %v833, %v825
        %v846 = vsel %vm840, %v835, %v827
        %v847 = vsel %vm840, %v837, %v829
        %v848 = vsel %vm840, %v839, %v831
        %849 = vset.pattern.permute.xlu0 5
        %850 = vperm.xlu0 %849, %v362
        %v851 = vpop.permute.xlu0 %850
        %853 = vset.pattern.permute.xlu0 5
        %854 = vperm.xlu0 %853, %v363
        %v855 = vpop.permute.xlu0 %854
        %857 = vset.pattern.permute.xlu0 5
        %858 = vperm.xlu0 %857, %v364
        %v859 = vpop.permute.xlu0 %858
        %861 = vset.pattern.permute.xlu0 5
        %862 = vperm.xlu0 %861, %v365
        %v863 = vpop.permute.xlu0 %862
        %v865 = vmul.f32 %v841, %v851
        %v866 = vmul.f32 %v845, %v851
        %v867 = vmul.f32 %v842, %v855
        %v868 = vmul.f32 %v846, %v855
        %v869 = vmul.f32 %v843, %v859
        %v870 = vmul.f32 %v847, %v859
        %v871 = vmul.f32 %v844, %v863
        %v872 = vmul.f32 %v848, %v863
        %v873 = vmul.f32 %v865, %v547
        %v874 = vmul.f32 %v866, %v548
        %v875 = vmul.f32 %v867, %v547
        %v876 = vmul.f32 %v868, %v548
        %v877 = vmul.f32 %v869, %v547
        %v878 = vmul.f32 %v870, %v548
        %v879 = vmul.f32 %v871, %v547
        %v880 = vmul.f32 %v872, %v548
        %v881 = vadd.f32 %v816, %v873
        %v882 = vadd.f32 %v817, %v874
        %v883 = vadd.f32 %v818, %v875
        %v884 = vadd.f32 %v819, %v876
        %v885 = vadd.f32 %v820, %v877
        %v886 = vadd.f32 %v821, %v878
        %v887 = vadd.f32 %v822, %v879
        %v888 = vadd.f32 %v823, %v880
        %889 = vrot.lane.b32.xlu0 %v529, 113
        %v890 = vpop.permute.xlu0 %889
        %891 = vrot.lane.b32.xlu0 %v531, 113
        %v892 = vpop.permute.xlu0 %891
        %893 = vrot.lane.b32.xlu0 %v533, 113
        %v894 = vpop.permute.xlu0 %893
        %895 = vrot.lane.b32.xlu0 %v535, 113
        %v896 = vpop.permute.xlu0 %895
        %897 = vrot.lane.b32.xlu0 %v530, 113
        %v898 = vpop.permute.xlu0 %897
        %899 = vrot.lane.b32.xlu0 %v532, 113
        %v900 = vpop.permute.xlu0 %899
        %901 = vrot.lane.b32.xlu0 %v534, 113
        %v902 = vpop.permute.xlu0 %901
        %903 = vrot.lane.b32.xlu0 %v536, 113
        %v904 = vpop.permute.xlu0 %903
        %vm905 = vcmp.lt.s32.totalorder %v383, 113
        %v906 = vsel %vm905, %v890, %v898
        %v907 = vsel %vm905, %v892, %v900
        %v908 = vsel %vm905, %v894, %v902
        %v909 = vsel %vm905, %v896, %v904
        %v910 = vsel %vm905, %v898, %v890
        %v911 = vsel %vm905, %v900, %v892
        %v912 = vsel %vm905, %v902, %v894
        %v913 = vsel %vm905, %v904, %v896
        %914 = vset.pattern.permute.xlu0 6
        %915 = vperm.xlu0 %914, %v362
        %v916 = vpop.permute.xlu0 %915
        %918 = vset.pattern.permute.xlu0 6
        %919 = vperm.xlu0 %918, %v363
        %v920 = vpop.permute.xlu0 %919
        %922 = vset.pattern.permute.xlu0 6
        %923 = vperm.xlu0 %922, %v364
        %v924 = vpop.permute.xlu0 %923
        %926 = vset.pattern.permute.xlu0 6
        %927 = vperm.xlu0 %926, %v365
        %v928 = vpop.permute.xlu0 %927
        %v930 = vmul.f32 %v906, %v916
        %v931 = vmul.f32 %v910, %v916
        %v932 = vmul.f32 %v907, %v920
        %v933 = vmul.f32 %v911, %v920
        %v934 = vmul.f32 %v908, %v924
        %v935 = vmul.f32 %v912, %v924
        %v936 = vmul.f32 %v909, %v928
        %v937 = vmul.f32 %v913, %v928
        %v938 = vmul.f32 %v930, %v541
        %v939 = vmul.f32 %v931, %v542
        %v940 = vmul.f32 %v932, %v541
        %v941 = vmul.f32 %v933, %v542
        %v942 = vmul.f32 %v934, %v541
        %v943 = vmul.f32 %v935, %v542
        %v944 = vmul.f32 %v936, %v541
        %v945 = vmul.f32 %v937, %v542
        %v946 = vadd.f32 %v881, %v938
        %v947 = vadd.f32 %v882, %v939
        %v948 = vadd.f32 %v883, %v940
        %v949 = vadd.f32 %v884, %v941
        %v950 = vadd.f32 %v885, %v942
        %v951 = vadd.f32 %v886, %v943
        %v952 = vadd.f32 %v887, %v944
        %v953 = vadd.f32 %v888, %v945
        %954 = vrot.lane.b32.xlu0 %v529, 112
        %v955 = vpop.permute.xlu0 %954
        %956 = vrot.lane.b32.xlu0 %v531, 112
        %v957 = vpop.permute.xlu0 %956
        %958 = vrot.lane.b32.xlu0 %v533, 112
        %v959 = vpop.permute.xlu0 %958
        %960 = vrot.lane.b32.xlu0 %v535, 112
        %v961 = vpop.permute.xlu0 %960
        %962 = vrot.lane.b32.xlu0 %v530, 112
        %v963 = vpop.permute.xlu0 %962
        %964 = vrot.lane.b32.xlu0 %v532, 112
        %v965 = vpop.permute.xlu0 %964
        %966 = vrot.lane.b32.xlu0 %v534, 112
        %v967 = vpop.permute.xlu0 %966
        %968 = vrot.lane.b32.xlu0 %v536, 112
        %v969 = vpop.permute.xlu0 %968
        %vm970 = vcmp.lt.s32.totalorder %v383, 112
        %v971 = vsel %vm970, %v955, %v963
        %v972 = vsel %vm970, %v957, %v965
        %v973 = vsel %vm970, %v959, %v967
        %v974 = vsel %vm970, %v961, %v969
        %v975 = vsel %vm970, %v963, %v955
        %v976 = vsel %vm970, %v965, %v957
        %v977 = vsel %vm970, %v967, %v959
        %v978 = vsel %vm970, %v969, %v961
        %979 = vset.pattern.permute.xlu0 7
        %980 = vperm.xlu0 %979, %v362
        %v981 = vpop.permute.xlu0 %980
        %983 = vset.pattern.permute.xlu0 7
        %984 = vperm.xlu0 %983, %v363
        %v985 = vpop.permute.xlu0 %984
        %987 = vset.pattern.permute.xlu0 7
        %988 = vperm.xlu0 %987, %v364
        %v989 = vpop.permute.xlu0 %988
        %991 = vset.pattern.permute.xlu0 7
        %992 = vperm.xlu0 %991, %v365
        %v993 = vpop.permute.xlu0 %992
        %v995 = vmul.f32 %v971, %v981
        %v996 = vmul.f32 %v975, %v981
        %v997 = vmul.f32 %v972, %v985
        %v998 = vmul.f32 %v976, %v985
        %v999 = vmul.f32 %v973, %v989
        %v1000 = vmul.f32 %v977, %v989
        %v1001 = vmul.f32 %v974, %v993
        %v1002 = vmul.f32 %v978, %v993
        %v1003 = vadd.f32 %v946, %v995
        %v1004 = vadd.f32 %v947, %v996
        %v1005 = vadd.f32 %v948, %v997
        %v1006 = vadd.f32 %v949, %v998
        %v1007 = vadd.f32 %v950, %v999
        %v1008 = vadd.f32 %v951, %v1000
        %v1009 = vadd.f32 %v952, %v1001
        %v1010 = vadd.f32 %v953, %v1002
        %1011 = vrot.lane.b32.xlu0 %v529, 111
        %v1012 = vpop.permute.xlu0 %1011
        %1013 = vrot.lane.b32.xlu0 %v531, 111
        %v1014 = vpop.permute.xlu0 %1013
        %1015 = vrot.lane.b32.xlu0 %v533, 111
        %v1016 = vpop.permute.xlu0 %1015
        %1017 = vrot.lane.b32.xlu0 %v535, 111
        %v1018 = vpop.permute.xlu0 %1017
        %1019 = vrot.lane.b32.xlu0 %v530, 111
        %v1020 = vpop.permute.xlu0 %1019
        %1021 = vrot.lane.b32.xlu0 %v532, 111
        %v1022 = vpop.permute.xlu0 %1021
        %1023 = vrot.lane.b32.xlu0 %v534, 111
        %v1024 = vpop.permute.xlu0 %1023
        %1025 = vrot.lane.b32.xlu0 %v536, 111
        %v1026 = vpop.permute.xlu0 %1025
        %vm1027 = vcmp.lt.s32.totalorder %v383, 111
        %v1028 = vsel %vm1027, %v1012, %v1020
        %v1029 = vsel %vm1027, %v1014, %v1022
        %v1030 = vsel %vm1027, %v1016, %v1024
        %v1031 = vsel %vm1027, %v1018, %v1026
        %v1032 = vsel %vm1027, %v1020, %v1012
        %v1033 = vsel %vm1027, %v1022, %v1014
        %v1034 = vsel %vm1027, %v1024, %v1016
        %v1035 = vsel %vm1027, %v1026, %v1018
        %1036 = vset.pattern.permute.xlu0 8
        %1037 = vperm.xlu0 %1036, %v362
        %v1038 = vpop.permute.xlu0 %1037
        %1040 = vset.pattern.permute.xlu0 8
        %1041 = vperm.xlu0 %1040, %v363
        %v1042 = vpop.permute.xlu0 %1041
        %1044 = vset.pattern.permute.xlu0 8
        %1045 = vperm.xlu0 %1044, %v364
        %v1046 = vpop.permute.xlu0 %1045
        %1048 = vset.pattern.permute.xlu0 8
        %1049 = vperm.xlu0 %1048, %v365
        %v1050 = vpop.permute.xlu0 %1049
        %v1052 = vmul.f32 %v1028, %v1038
        %v1053 = vmul.f32 %v1032, %v1038
        %v1054 = vmul.f32 %v1029, %v1042
        %v1055 = vmul.f32 %v1033, %v1042
        %v1056 = vmul.f32 %v1030, %v1046
        %v1057 = vmul.f32 %v1034, %v1046
        %v1058 = vmul.f32 %v1031, %v1050
        %v1059 = vmul.f32 %v1035, %v1050
        %v1060 = vmul.f32 %v1052, %v547
        %v1061 = vmul.f32 %v1053, %v548
        %v1062 = vmul.f32 %v1054, %v547
        %v1063 = vmul.f32 %v1055, %v548
        %v1064 = vmul.f32 %v1056, %v547
        %v1065 = vmul.f32 %v1057, %v548
        %v1066 = vmul.f32 %v1058, %v547
        %v1067 = vmul.f32 %v1059, %v548
        %v1068 = vadd.f32 %v1003, %v1060
        %v1069 = vadd.f32 %v1004, %v1061
        %v1070 = vadd.f32 %v1005, %v1062
        %v1071 = vadd.f32 %v1006, %v1063
        %v1072 = vadd.f32 %v1007, %v1064
        %v1073 = vadd.f32 %v1008, %v1065
        %v1074 = vadd.f32 %v1009, %v1066
        %v1075 = vadd.f32 %v1010, %v1067
        %1076 = vset.pattern.permute.xlu0 10
        %1077 = vperm.xlu0 %1076, %v362
        %v1078 = vpop.permute.xlu0 %1077
        %1080 = vset.pattern.permute.xlu0 10
        %1081 = vperm.xlu0 %1080, %v363
        %v1082 = vpop.permute.xlu0 %1081
        %1084 = vset.pattern.permute.xlu0 10
        %1085 = vperm.xlu0 %1084, %v364
        %v1086 = vpop.permute.xlu0 %1085
        %1088 = vset.pattern.permute.xlu0 10
        %1089 = vperm.xlu0 %1088, %v365
        %v1090 = vpop.permute.xlu0 %1089
        %v1092 = vadd.f32 %v1068, %v1078
        %v1093 = vadd.f32 %v1069, %v1078
        %v1094 = vadd.f32 %v1070, %v1082
        %v1095 = vadd.f32 %v1071, %v1082
        %v1096 = vadd.f32 %v1072, %v1086
        %v1097 = vadd.f32 %v1073, %v1086
        %v1098 = vadd.f32 %v1074, %v1090
        %v1099 = vadd.f32 %v1075, %v1090
        %v1100 = vmax.f32 %v1092, 0.0
        %v1101 = vmax.f32 %v1093, 0.0
        %v1102 = vmax.f32 %v1094, 0.0
        %v1103 = vmax.f32 %v1095, 0.0
        %v1104 = vmax.f32 %v1096, 0.0
        %v1105 = vmax.f32 %v1097, 0.0
        %v1106 = vmax.f32 %v1098, 0.0
        %v1107 = vmax.f32 %v1099, 0.0
        %v1108 = vmin.f32 %v1100, 6.0
        %v1109 = vmin.f32 %v1101, 6.0
        %v1110 = vmin.f32 %v1102, 6.0
        %v1111 = vmin.f32 %v1103, 6.0
        %v1112 = vmin.f32 %v1104, 6.0
        %v1113 = vmin.f32 %v1105, 6.0
        %v1114 = vmin.f32 %v1106, 6.0
        %v1115 = vmin.f32 %v1107, 6.0
        %v1116 = vld [vmem:[%s5] sm:$0xf]
        %v1117 = vpack.c.bf16 %v1110, %v1108
        %v1118 = vpack.c.bf16 %v1111, %v1109
        %v1119 = vpack.c.bf16 %v1114, %v1112
        %v1120 = vpack.c.bf16 %v1115, %v1113
        %v1122 = vsel %vm380, %v1116, 0
        %1124 = vmatpush.bf16.msra.mxu0 0
        %1125 = vmatpush.bf16.msra.mxu0 0
        %1126 = vmatpush.bf16.msra.mxu0 0
        %1127 = vmatpush.bf16.msra.mxu0 0
        %1128 = vmatpush.bf16.msra.mxu0 0
        %1129 = vmatpush.bf16.msra.mxu0 0
        %1130 = vmatpush.bf16.msra.mxu0 %v1119
        %1131 = vmatpush.bf16.msra.mxu0 %v1117
        %1132 = vmatmul.bf16.gmra.mxu0 %v1122
        %v1133 = vpop.f32.mrf.mxu0
        %v1134 = vadd.f32 0.0, %v1133
        %v1135 = vpop.f32.mrf.mxu0
        %1136 = vdwg.mxu0
        %1137 = vmatpush.bf16.msra.mxu0 0
        %1138 = vmatpush.bf16.msra.mxu0 0
        %1139 = vmatpush.bf16.msra.mxu0 0
        %1140 = vmatpush.bf16.msra.mxu0 0
        %1141 = vmatpush.bf16.msra.mxu0 0
        %1142 = vmatpush.bf16.msra.mxu0 0
        %1143 = vmatpush.bf16.msra.mxu0 %v1120
        %1144 = vmatpush.bf16.msra.mxu0 %v1118
        %1145 = vmatmul.bf16.gmra.mxu0 %v1122
        %v1146 = vpop.f32.mrf.mxu0
        %v1147 = vadd.f32 0.0, %v1146
        %v1148 = vpop.f32.mrf.mxu0
        %1149 = vdwg.mxu0
        %1150 = vrot.lane.b32.xlu0 %v1134, 112
        %v1151 = vpop.permute.xlu0 %1150
        %1152 = vrot.lane.b32.xlu0 %v1147, 112
        %v1153 = vpop.permute.xlu0 %1152
        %v1154 = vsel %vm970, %v1151, %v1153
        %1155 = vset.pattern.permute.xlu0 11
        %1156 = vperm.xlu0 %1155, %v362
        %v1157 = vpop.permute.xlu0 %1156
        %v1159 = vadd.f32 %v1154, %v1157
        %v1160 = vadd.f32 %v1159, %v366
        %1161 = vst [vmem:[%s352] sm:$0xff] %v1160
        %s1162 = sand.u32 %s195, 1
        %s1163 = scalar_lea.sflag [#allocation4], %s1162
        %s1164 = sand.u32 %s195, 1
        %s1165 = smul.addr %s1164, 8
        %s1166 = scalar_lea.vmem [#allocation7], %s1165
        // Predicated region
        $region53: #{tpu_custom_call.1} parent=43 // pred_check
          %p1167 = pneg %p205
        $region54: #{tpu_custom_call.1} parent=43 // pred_check_branch
          %1169 = sbr.rel (%p1167) target = $region56
        $region55: #{tpu_custom_call.1} parent=43 // pred_region
          %1171 = vsyncadd %s1163, 0
          %s1172 = smul.addr %s31, 2
          %s1173 = sadd.s32 %s30, %s1172
          %s1174 = smul.addr %s1173, 8
          %s1175 = scalar_lea.hbm %s6, %s1174
          %s1177 = sshll.u32 %s1166, 4
          %s1178 = int_to_ptr.vmem [resolvable:$true] %s1177
          %s1179 = sshll.u32 %s1175, 4
          %s1180 = int_to_ptr.hbm [resolvable:$true] %s1179
          %1182 = dma.vmem_to_hbm [thread:$0]  %s1178, 128, %s1180, %s1163
        $region56: #{tpu_custom_call.1} parent=43 // pred_fallthru
          _
      $region44: #{tpu_custom_call.1} parent=5 // pred_fallthru
        _
      %p1183 = scmp.le.s32.totalorder 2, %s21
      // Predicated region
      $region57: #{tpu_custom_call.1} parent=5 // pred_check
        %p1184 = pneg %p1183
      $region58: #{tpu_custom_call.1} parent=5 // pred_check_branch
        %1186 = sbr.rel (%p1184) target = $region60
      $region59: #{tpu_custom_call.1} parent=5 // pred_region
        %s1187 = ssub.s32 %s21, 2
        // Predicated region
        $region61: #{tpu_custom_call.1} parent=59 // pred_check
          %p1188 = pneg %p211
        $region62: #{tpu_custom_call.1} parent=59 // pred_check_branch
          %1190 = sbr.rel (%p1188) target = $region64
        $region63: #{tpu_custom_call.1} parent=59 // pred_region
          %s1191 = sand.u32 %s196, 1
          %s1192 = scalar_lea.sflag [#allocation4], %s1191
          %s1193 = sand.u32 %s196, 1
          %s1194 = smul.addr %s1193, 8
          %s1195 = scalar_lea.vmem [#allocation7], %s1194
          %1197 = dma.done %s1192, 128
        $region64: #{tpu_custom_call.1} parent=59 // pred_fallthru
          _
      $region60: #{tpu_custom_call.1} parent=5 // pred_fallthru
        _
    $region6: #{tpu_custom_call.1} parent=1 // loop_footer
      %s25 = sadd.s32 1, %s21
    $region7: #{tpu_custom_call.1} parent=1 // loop_footer_branch
      %20 = sbr.rel target = $region3
    $region8: #{tpu_custom_call.1} parent=1 // loop_exit
      _
    %1198 = vsyncpa [#allocation3], 1
    %s1199 = scalar_lea.sflag [#allocation3], 1
    %1200 = vsyncpa %s1199, 1
    %1201 = vsyncpa [#allocation6], 1
    %s1202 = scalar_lea.sflag [#allocation6], 1
    %1203 = vsyncpa %s1202, 1
    %1204 = vsyncpa [#allocation4], 1
    %s1205 = scalar_lea.sflag [#allocation4], 1
    %1206 = vsyncpa %s1205, 1

</llo_original>
